<compile_context>
chip_gen: v6e
topology: v6e:2x2x1
jax: 0.10.0
libtpu: 0.0.40
codegen_flags: <defaults>
</compile_context>

<pallas_src>
import functools

import jax
import jax.numpy as jnp
from jax.experimental import pallas as pl
from jax.experimental.pallas import tpu as pltpu


def _sepconv_kernel(x_ref, dw_ref, pw_ref, o_ref, acc3_ref, accf_ref,
                    *pad_scratch, kh, kw, pad, h, w, h_out, w_out, mxu_dtype):
    # x_ref   : (C_in, H, W)              NCHW-native input tile (one sample)
    # dw_ref  : (KH*KW, C_in, 1, 1)       depthwise taps, broadcast-ready
    # pw_ref  : (C_out, C_in)             1x1 pointwise weight
    # o_ref   : (C_out, H_out*W_out)      lane-dense flattened output tile
    # acc3_ref: (C_in, H_out, W_out) f32  VMEM scratch: depthwise accumulator
    # accf_ref: (C_in, H_out*W_out) f32   VMEM scratch: flattened matmul operand
    # pad_scratch = (xpad_ref,) iff pad>0: (C_in, H+2p, W+2p) padded input
    c_in = x_ref.shape[0]

    if pad:
        xpad_ref = pad_scratch[0]
        wp = w + 2 * pad
        zdt = xpad_ref.dtype
        # Zero ONLY the halo border each step (interior is overwritten below).
        # This is correct on every grid step and for any split of the
        # "parallel" batch axis across TensorCores (no program_id==0 guard).
        xpad_ref[:, :pad, :] = jnp.zeros((c_in, pad, wp), zdt)
        xpad_ref[:, pad + h:, :] = jnp.zeros((c_in, pad, wp), zdt)
        xpad_ref[:, pad:pad + h, :pad] = jnp.zeros((c_in, h, pad), zdt)
        xpad_ref[:, pad:pad + h, pad + w:] = jnp.zeros((c_in, h, pad), zdt)
        # Interior store stays strictly inside [pad:pad+h, pad:pad+w].
        xpad_ref[:, pad:pad + h, pad:pad + w] = x_ref[...]
        src = xpad_ref
    else:
        # pad == 0: no scratch, no VMEM->VMEM round trip; read taps from x_ref.
        src = x_ref

    # Depthwise conv: statically unrolled kh*kw tap loop. H-shifts are sublane
    # offsets, W-shifts are statically-offset lane slices from the padded
    # scratch. f32 accumulation on the VPU (v5e has no bf16 VALU).
    acc = jnp.zeros((c_in, h_out, w_out), jnp.float32)
    for i in range(kh):
        for j in range(kw):
            xs = src[:, i:i + h_out, j:j + w_out].astype(jnp.float32)
            ws = dw_ref[i * kw + j].astype(jnp.float32)      # (C_in, 1, 1)
            acc = acc + xs * ws
    acc3_ref[...] = acc   # park accumulator in VMEM (bounded vreg pressure)

    # Flatten spatial onto the lane axis via plain ref loads/stores (avoids a
    # sublane+lane-merging value reshape, which may not lower on Mosaic).
    for y in range(h_out):
        accf_ref[:, y * w_out:(y + 1) * w_out] = acc3_ref[:, y, :]

    # Pointwise 1x1 conv fused in: (C_out, C_in) @ (C_in, H_out*W_out) on the
    # MXU with a lane-dense N dim; bf16 operands when inputs are bf16, f32 acc.
    y2 = jnp.dot(pw_ref[...].astype(mxu_dtype),
                 accf_ref[...].astype(mxu_dtype),
                 preferred_element_type=jnp.float32)
    o_ref[...] = y2.astype(o_ref.dtype)   # dense (C_out, H_out*W_out) store


def _tile_bytes(shape, dtype):
    """Approximate VMEM footprint of one buffer after (sublane, lane) padding."""
    itemsize = jnp.dtype(dtype).itemsize
    sublane = 8 * max(1, 4 // itemsize)          # 8 for f32, 16 for bf16, ...
    shape = tuple(int(d) for d in shape)
    if len(shape) < 2:
        shape = (1,) * (2 - len(shape)) + shape
    lead = 1
    for d in shape[:-2]:
        lead *= d
    rows = -(-shape[-2] // sublane) * sublane
    cols = -(-shape[-1] // 128) * 128
    return lead * rows * cols * itemsize


def separable_conv2d(x, dw_weight, pw_weight, *, stride=1, padding=0, dilation=1):
    """Forward pass of SeparableConv2d (bias=False). NCHW in, NCHW out.

    x:         (N, C_in, H, W)
    dw_weight: (C_in, 1, KH, KW)    nn.Conv2d(groups=C_in) weight
    pw_weight: (C_out, C_in, 1, 1)  1x1 conv weight
    """
    # TODO(synk): stride>1 / dilation>1 not implemented (module defaults are 1).
    assert stride == 1 and dilation == 1, "only stride=1, dilation=1 supported"

    n, c_in, h, w = x.shape
    _, _, kh, kw = dw_weight.shape
    c_out = pw_weight.shape[0]

    hp, wp = h + 2 * padding, w + 2 * padding
    h_out = hp - kh + 1
    w_out = wp - kw + 1
    m = h_out * w_out

    # Weight-only host-side relayouts (tiny); NO activation transposes.
    dw = jnp.transpose(dw_weight[:, 0], (1, 2, 0)).reshape(kh * kw, c_in)
    dw = dw[:, :, None, None]                      # (KH*KW, C_in, 1, 1)
    pw = pw_weight[:, :, 0, 0]                     # (C_out, C_in)

    # bf16 operands for the MXU when inputs/weights are bf16 (f32 accumulate
    # is kept via preferred_element_type); otherwise stay f32.
    mxu_dtype = (jnp.bfloat16
                 if (x.dtype == jnp.bfloat16 and pw.dtype == jnp.bfloat16)
                 else jnp.float32)

    kernel = functools.partial(
        _sepconv_kernel, kh=kh, kw=kw, pad=padding,
        h=h, w=w, h_out=h_out, w_out=w_out, mxu_dtype=mxu_dtype)

    scratch_shapes = [
        pltpu.VMEM((c_in, h_out, w_out), jnp.float32),   # depthwise accumulator
        pltpu.VMEM((c_in, m), jnp.float32),              # flattened matmul rhs
    ]
    if padding:
        scratch_shapes.append(pltpu.VMEM((c_in, hp, wp), x.dtype))

    # Explicit scoped-VMEM budget from the actual block+scratch footprint
    # (default scoped limit is hit long before physical VMEM on v6e/v7x).
    needed = (2 * _tile_bytes((c_in, h, w), x.dtype)            # dbl-buffered in
              + 2 * _tile_bytes((c_out, m), x.dtype)            # dbl-buffered out
              + _tile_bytes((kh * kw, c_in, 1, 1), dw.dtype)
              + _tile_bytes((c_out, c_in), pw.dtype)
              + _tile_bytes((c_in, h_out, w_out), jnp.float32)
              + _tile_bytes((c_in, m), jnp.float32)
              + (_tile_bytes((c_in, hp, wp), x.dtype) if padding else 0))
    vmem_limit = int(min(max(2 * needed, 32 * 2 ** 20), 64 * 2 ** 20))

    y_flat = pl.pallas_call(
        kernel,
        out_shape=jax.ShapeDtypeStruct((n, c_out, m), x.dtype),
        grid=(n,),
        in_specs=[
            pl.BlockSpec((None, c_in, h, w), lambda i: (i, 0, 0, 0)),
            pl.BlockSpec((kh * kw, c_in, 1, 1), lambda i: (0, 0, 0, 0)),
            pl.BlockSpec((c_out, c_in), lambda i: (0, 0)),
        ],
        out_specs=pl.BlockSpec((None, c_out, m), lambda i: (i, 0, 0)),
        scratch_shapes=scratch_shapes,
        compiler_params=pltpu.CompilerParams(
            dimension_semantics=("parallel",),    # batch sharded across TCs
            vmem_limit_bytes=vmem_limit),
    )(x, dw, pw)

    # TODO(synk): for large H*W add H-tiling with a (kh-1)-row halo and a 2-D
    # (n, h_tiles) parallel grid so per-step blocks fit v7x's 64 MiB VMEM;
    # unnecessary at EEGNet-scale shapes.
    return y_flat.reshape(n, c_out, h_out, w_out)   # free metadata reshape


def _reference(x, dw_weight, pw_weight, padding):
    c_in = x.shape[1]
    ref_dw = jax.lax.conv_general_dilated(
        x, dw_weight, window_strides=(1, 1),
        padding=[(padding, padding), (padding, padding)],
        dimension_numbers=("NCHW", "OIHW", "NCHW"), feature_group_count=c_in)
    return jax.lax.conv_general_dilated(
        ref_dw, pw_weight, window_strides=(1, 1), padding="VALID",
        dimension_numbers=("NCHW", "OIHW", "NCHW"))


if __name__ == "__main__":
    key = jax.random.PRNGKey(0)
    k1, k2, k3 = jax.random.split(key, 3)

    N, C_in, H, W = 2, 4, 16, 16
    C_out, K, PAD = 8, 3, 1

    x = jax.random.normal(k1, (N, C_in, H, W), dtype=jnp.float32)
    dw_weight = 0.1 * jax.random.normal(k2, (C_in, 1, K, K), dtype=jnp.float32)
    pw_weight = 0.1 * jax.random.normal(k3, (C_out, C_in, 1, 1), dtype=jnp.float32)

    # padded path (as used by the module spec)
    y = jax.block_until_ready(separable_conv2d(x, dw_weight, pw_weight, padding=PAD))
    ref = _reference(x, dw_weight, pw_weight, PAD)
    assert y.shape == ref.shape, (y.shape, ref.shape)
    assert jnp.allclose(y, ref, atol=1e-4, rtol=1e-4), float(jnp.max(jnp.abs(y - ref)))

    # pad == 0 path (no padded scratch)
    y0 = jax.block_until_ready(separable_conv2d(x, dw_weight, pw_weight, padding=0))
    ref0 = _reference(x, dw_weight, pw_weight, 0)
    assert y0.shape == ref0.shape, (y0.shape, ref0.shape)
    assert jnp.allclose(y0, ref0, atol=1e-4, rtol=1e-4), float(jnp.max(jnp.abs(y0 - ref0)))

    print("KERNEL_OK")
</pallas_src>

<mosaic_0001>
module attributes {stable_mosaic.version = 11 : i64} {
  func.func @_sepconv_kernel(%arg0: i32, %arg1: memref<1x4x16x16xf32, #tpu.memory_space<vmem>>, %arg2: memref<9x4x1x1xf32, #tpu.memory_space<vmem>>, %arg3: memref<8x4xf32, #tpu.memory_space<vmem>>, %arg4: memref<1x8x256xf32, #tpu.memory_space<vmem>>, %arg5: memref<4x16x16xf32, #tpu.memory_space<vmem>>, %arg6: memref<4x256xf32, #tpu.memory_space<vmem>>, %arg7: memref<4x18x18xf32, #tpu.memory_space<vmem>>) attributes {dimension_semantics = [#tpu.dimension_semantics<parallel>], iteration_bounds = array<i64: 2>, scalar_prefetch = 0 : i64, scratch_operands = 3 : i64, tpu.core_type = #tpu.core_type<tc>, window_params = [{transform_indices = @transform_0, window_bounds = array<i64: 1, 4, 16, 16>}, {pipeline_mode = #tpu.pipeline_mode<synchronous>, transform_indices = @transform_1, window_bounds = array<i64: 9, 4, 1, 1>}, {pipeline_mode = #tpu.pipeline_mode<synchronous>, transform_indices = @transform_2, window_bounds = array<i64: 8, 4>}, {transform_indices = @transform_3, window_bounds = array<i64: 1, 8, 256>}]} {
    %cst = arith.constant 0.000000e+00 : f32
    %0 = vector.broadcast %cst : f32 to vector<4x1x18xf32>
    %c0 = arith.constant 0 : index
    %c0_0 = arith.constant 0 : index
    %c0_1 = arith.constant 0 : index
    %1 = vector.load %arg7[%c0, %c0_0, %c0_1] : memref<4x18x18xf32, #tpu.memory_space<vmem>>, vector<4x1x18xf32>
    tpu.vector_store %arg7[%c0, %c0_0, %c0_1], %0 {strides = array<i32>} : memref<4x18x18xf32, #tpu.memory_space<vmem>>, vector<4x1x18xf32>,
    %cst_2 = arith.constant 0.000000e+00 : f32
    %2 = vector.broadcast %cst_2 : f32 to vector<4x1x18xf32>
    %c0_3 = arith.constant 0 : index
    %c17 = arith.constant 17 : index
    %c0_4 = arith.constant 0 : index
    %3 = vector.load %arg7[%c0_3, %c17, %c0_4] : memref<4x18x18xf32, #tpu.memory_space<vmem>>, vector<4x1x18xf32>
    tpu.vector_store %arg7[%c0_3, %c17, %c0_4], %2 {strides = array<i32>} : memref<4x18x18xf32, #tpu.memory_space<vmem>>, vector<4x1x18xf32>,
    %cst_5 = arith.constant 0.000000e+00 : f32
    %4 = vector.broadcast %cst_5 : f32 to vector<4x16x1xf32>
    %c0_6 = arith.constant 0 : index
    %c1 = arith.constant 1 : index
    %c0_7 = arith.constant 0 : index
    %5 = vector.load %arg7[%c0_6, %c1, %c0_7] : memref<4x18x18xf32, #tpu.memory_space<vmem>>, vector<4x16x1xf32>
    tpu.vector_store %arg7[%c0_6, %c1, %c0_7], %4 {strides = array<i32>} : memref<4x18x18xf32, #tpu.memory_space<vmem>>, vector<4x16x1xf32>,
    %cst_8 = arith.constant 0.000000e+00 : f32
    %6 = vector.broadcast %cst_8 : f32 to vector<4x16x1xf32>
    %c0_9 = arith.constant 0 : index
    %c1_10 = arith.constant 1 : index
    %c17_11 = arith.constant 17 : index
    %7 = vector.load %arg7[%c0_9, %c1_10, %c17_11] : memref<4x18x18xf32, #tpu.memory_space<vmem>>, vector<4x16x1xf32>
    tpu.vector_store %arg7[%c0_9, %c1_10, %c17_11], %6 {strides = array<i32>} : memref<4x18x18xf32, #tpu.memory_space<vmem>>, vector<4x16x1xf32>,
    %c0_12 = arith.constant 0 : index
    %c0_13 = arith.constant 0 : index
    %c0_14 = arith.constant 0 : index
    %c0_15 = arith.constant 0 : index
    %8 = vector.load %arg1[%c0_12, %c0_13, %c0_14, %c0_15] : memref<1x4x16x16xf32, #tpu.memory_space<vmem>>, vector<1x4x16x16xf32>
    %9 = vector.shape_cast %8 : vector<1x4x16x16xf32> to vector<4x16x16xf32>
    %c0_16 = arith.constant 0 : index
    %c1_17 = arith.constant 1 : index
    %c1_18 = arith.constant 1 : index
    %10 = vector.load %arg7[%c0_16, %c1_17, %c1_18] : memref<4x18x18xf32, #tpu.memory_space<vmem>>, vector<4x16x16xf32>
    tpu.vector_store %arg7[%c0_16, %c1_17, %c1_18], %9 {strides = array<i32>} : memref<4x18x18xf32, #tpu.memory_space<vmem>>, vector<4x16x16xf32>,
    %cst_19 = arith.constant 0.000000e+00 : f32
    %11 = vector.broadcast %cst_19 : f32 to vector<4x16x16xf32>
    %c0_20 = arith.constant 0 : index
    %c0_21 = arith.constant 0 : index
    %c0_22 = arith.constant 0 : index
    %12 = vector.load %arg7[%c0_20, %c0_21, %c0_22] : memref<4x18x18xf32, #tpu.memory_space<vmem>>, vector<4x16x16xf32>
    %c0_23 = arith.constant 0 : index
    %c0_24 = arith.constant 0 : index
    %c0_25 = arith.constant 0 : index
    %c0_26 = arith.constant 0 : index
    %13 = vector.load %arg2[%c0_23, %c0_24, %c0_25, %c0_26] : memref<9x4x1x1xf32, #tpu.memory_space<vmem>>, vector<1x4x1x1xf32>
    %14 = vector.shape_cast %13 : vector<1x4x1x1xf32> to vector<4x1x1xf32>
    %15 = vector.broadcast %14 : vector<4x1x1xf32> to vector<4x16x16xf32>
    %16 = arith.mulf %12, %15 : vector<4x16x16xf32>
    %17 = arith.addf %11, %16 : vector<4x16x16xf32>
    %c0_27 = arith.constant 0 : index
    %c0_28 = arith.constant 0 : index
    %c1_29 = arith.constant 1 : index
    %18 = vector.load %arg7[%c0_27, %c0_28, %c1_29] : memref<4x18x18xf32, #tpu.memory_space<vmem>>, vector<4x16x16xf32>
    %c1_30 = arith.constant 1 : index
    %c0_31 = arith.constant 0 : index
    %c0_32 = arith.constant 0 : index
    %c0_33 = arith.constant 0 : index
    %19 = vector.load %arg2[%c1_30, %c0_31, %c0_32, %c0_33] : memref<9x4x1x1xf32, #tpu.memory_space<vmem>>, vector<1x4x1x1xf32>
    %20 = vector.shape_cast %19 : vector<1x4x1x1xf32> to vector<4x1x1xf32>
    %21 = vector.broadcast %20 : vector<4x1x1xf32> to vector<4x16x16xf32>
    %22 = arith.mulf %18, %21 : vector<4x16x16xf32>
    %23 = arith.addf %17, %22 : vector<4x16x16xf32>
    %c0_34 = arith.constant 0 : index
    %c0_35 = arith.constant 0 : index
    %c2 = arith.constant 2 : index
    %24 = vector.load %arg7[%c0_34, %c0_35, %c2] : memref<4x18x18xf32, #tpu.memory_space<vmem>>, vector<4x16x16xf32>
    %c2_36 = arith.constant 2 : index
    %c0_37 = arith.constant 0 : index
    %c0_38 = arith.constant 0 : index
    %c0_39 = arith.constant 0 : index
    %25 = vector.load %arg2[%c2_36, %c0_37, %c0_38, %c0_39] : memref<9x4x1x1xf32, #tpu.memory_space<vmem>>, vector<1x4x1x1xf32>
    %26 = vector.shape_cast %25 : vector<1x4x1x1xf32> to vector<4x1x1xf32>
    %27 = vector.broadcast %26 : vector<4x1x1xf32> to vector<4x16x16xf32>
    %28 = arith.mulf %24, %27 : vector<4x16x16xf32>
    %29 = arith.addf %23, %28 : vector<4x16x16xf32>
    %c0_40 = arith.constant 0 : index
    %c1_41 = arith.constant 1 : index
    %c0_42 = arith.constant 0 : index
    %30 = vector.load %arg7[%c0_40, %c1_41, %c0_42] : memref<4x18x18xf32, #tpu.memory_space<vmem>>, vector<4x16x16xf32>
    %c3 = arith.constant 3 : index
    %c0_43 = arith.constant 0 : index
    %c0_44 = arith.constant 0 : index
    %c0_45 = arith.constant 0 : index
    %31 = vector.load %arg2[%c3, %c0_43, %c0_44, %c0_45] : memref<9x4x1x1xf32, #tpu.memory_space<vmem>>, vector<1x4x1x1xf32>
    %32 = vector.shape_cast %31 : vector<1x4x1x1xf32> to vector<4x1x1xf32>
    %33 = vector.broadcast %32 : vector<4x1x1xf32> to vector<4x16x16xf32>
    %34 = arith.mulf %30, %33 : vector<4x16x16xf32>
    %35 = arith.addf %29, %34 : vector<4x16x16xf32>
    %c0_46 = arith.constant 0 : index
    %c1_47 = arith.constant 1 : index
    %c1_48 = arith.constant 1 : index
    %36 = vector.load %arg7[%c0_46, %c1_47, %c1_48] : memref<4x18x18xf32, #tpu.memory_space<vmem>>, vector<4x16x16xf32>
    %c4 = arith.constant 4 : index
    %c0_49 = arith.constant 0 : index
    %c0_50 = arith.constant 0 : index
    %c0_51 = arith.constant 0 : index
    %37 = vector.load %arg2[%c4, %c0_49, %c0_50, %c0_51] : memref<9x4x1x1xf32, #tpu.memory_space<vmem>>, vector<1x4x1x1xf32>
    %38 = vector.shape_cast %37 : vector<1x4x1x1xf32> to vector<4x1x1xf32>
    %39 = vector.broadcast %38 : vector<4x1x1xf32> to vector<4x16x16xf32>
    %40 = arith.mulf %36, %39 : vector<4x16x16xf32>
    %41 = arith.addf %35, %40 : vector<4x16x16xf32>
    %c0_52 = arith.constant 0 : index
    %c1_53 = arith.constant 1 : index
    %c2_54 = arith.constant 2 : index
    %42 = vector.load %arg7[%c0_52, %c1_53, %c2_54] : memref<4x18x18xf32, #tpu.memory_space<vmem>>, vector<4x16x16xf32>
    %c5 = arith.constant 5 : index
    %c0_55 = arith.constant 0 : index
    %c0_56 = arith.constant 0 : index
    %c0_57 = arith.constant 0 : index
    %43 = vector.load %arg2[%c5, %c0_55, %c0_56, %c0_57] : memref<9x4x1x1xf32, #tpu.memory_space<vmem>>, vector<1x4x1x1xf32>
    %44 = vector.shape_cast %43 : vector<1x4x1x1xf32> to vector<4x1x1xf32>
    %45 = vector.broadcast %44 : vector<4x1x1xf32> to vector<4x16x16xf32>
    %46 = arith.mulf %42, %45 : vector<4x16x16xf32>
    %47 = arith.addf %41, %46 : vector<4x16x16xf32>
    %c0_58 = arith.constant 0 : index
    %c2_59 = arith.constant 2 : index
    %c0_60 = arith.constant 0 : index
    %48 = vector.load %arg7[%c0_58, %c2_59, %c0_60] : memref<4x18x18xf32, #tpu.memory_space<vmem>>, vector<4x16x16xf32>
    %c6 = arith.constant 6 : index
    %c0_61 = arith.constant 0 : index
    %c0_62 = arith.constant 0 : index
    %c0_63 = arith.constant 0 : index
    %49 = vector.load %arg2[%c6, %c0_61, %c0_62, %c0_63] : memref<9x4x1x1xf32, #tpu.memory_space<vmem>>, vector<1x4x1x1xf32>
    %50 = vector.shape_cast %49 : vector<1x4x1x1xf32> to vector<4x1x1xf32>
    %51 = vector.broadcast %50 : vector<4x1x1xf32> to vector<4x16x16xf32>
    %52 = arith.mulf %48, %51 : vector<4x16x16xf32>
    %53 = arith.addf %47, %52 : vector<4x16x16xf32>
    %c0_64 = arith.constant 0 : index
    %c2_65 = arith.constant 2 : index
    %c1_66 = arith.constant 1 : index
    %54 = vector.load %arg7[%c0_64, %c2_65, %c1_66] : memref<4x18x18xf32, #tpu.memory_space<vmem>>, vector<4x16x16xf32>
    %c7 = arith.constant 7 : index
    %c0_67 = arith.constant 0 : index
    %c0_68 = arith.constant 0 : index
    %c0_69 = arith.constant 0 : index
    %55 = vector.load %arg2[%c7, %c0_67, %c0_68, %c0_69] : memref<9x4x1x1xf32, #tpu.memory_space<vmem>>, vector<1x4x1x1xf32>
    %56 = vector.shape_cast %55 : vector<1x4x1x1xf32> to vector<4x1x1xf32>
    %57 = vector.broadcast %56 : vector<4x1x1xf32> to vector<4x16x16xf32>
    %58 = arith.mulf %54, %57 : vector<4x16x16xf32>
    %59 = arith.addf %53, %58 : vector<4x16x16xf32>
    %c0_70 = arith.constant 0 : index
    %c2_71 = arith.constant 2 : index
    %c2_72 = arith.constant 2 : index
    %60 = vector.load %arg7[%c0_70, %c2_71, %c2_72] : memref<4x18x18xf32, #tpu.memory_space<vmem>>, vector<4x16x16xf32>
    %c8 = arith.constant 8 : index
    %c0_73 = arith.constant 0 : index
    %c0_74 = arith.constant 0 : index
    %c0_75 = arith.constant 0 : index
    %61 = vector.load %arg2[%c8, %c0_73, %c0_74, %c0_75] : memref<9x4x1x1xf32, #tpu.memory_space<vmem>>, vector<1x4x1x1xf32>
    %62 = vector.shape_cast %61 : vector<1x4x1x1xf32> to vector<4x1x1xf32>
    %63 = vector.broadcast %62 : vector<4x1x1xf32> to vector<4x16x16xf32>
    %64 = arith.mulf %60, %63 : vector<4x16x16xf32>
    %65 = arith.addf %59, %64 : vector<4x16x16xf32>
    %c0_76 = arith.constant 0 : index
    %c0_77 = arith.constant 0 : index
    %c0_78 = arith.constant 0 : index
    %66 = vector.load %arg5[%c0_76, %c0_77, %c0_78] : memref<4x16x16xf32, #tpu.memory_space<vmem>>, vector<4x16x16xf32>
    tpu.vector_store %arg5[%c0_76, %c0_77, %c0_78], %65 {strides = array<i32>} : memref<4x16x16xf32, #tpu.memory_space<vmem>>, vector<4x16x16xf32>,
    %c0_79 = arith.constant 0 : index
    %c0_80 = arith.constant 0 : index
    %c0_81 = arith.constant 0 : index
    %67 = vector.load %arg5[%c0_79, %c0_80, %c0_81] : memref<4x16x16xf32, #tpu.memory_space<vmem>>, vector<4x1x16xf32>
    %68 = vector.shape_cast %67 : vector<4x1x16xf32> to vector<4x16xf32>
    %c0_82 = arith.constant 0 : index
    %c0_83 = arith.constant 0 : index
    %69 = vector.load %arg6[%c0_82, %c0_83] : memref<4x256xf32, #tpu.memory_space<vmem>>, vector<4x16xf32>
    tpu.vector_store %arg6[%c0_82, %c0_83], %68 {strides = array<i32>} : memref<4x256xf32, #tpu.memory_space<vmem>>, vector<4x16xf32>,
    %c0_84 = arith.constant 0 : index
    %c1_85 = arith.constant 1 : index
    %c0_86 = arith.constant 0 : index
    %70 = vector.load %arg5[%c0_84, %c1_85, %c0_86] : memref<4x16x16xf32, #tpu.memory_space<vmem>>, vector<4x1x16xf32>
    %71 = vector.shape_cast %70 : vector<4x1x16xf32> to vector<4x16xf32>
    %c0_87 = arith.constant 0 : index
    %c16 = arith.constant 16 : index
    %72 = vector.load %arg6[%c0_87, %c16] : memref<4x256xf32, #tpu.memory_space<vmem>>, vector<4x16xf32>
    tpu.vector_store %arg6[%c0_87, %c16], %71 {strides = array<i32>} : memref<4x256xf32, #tpu.memory_space<vmem>>, vector<4x16xf32>,
    %c0_88 = arith.constant 0 : index
    %c2_89 = arith.constant 2 : index
    %c0_90 = arith.constant 0 : index
    %73 = vector.load %arg5[%c0_88, %c2_89, %c0_90] : memref<4x16x16xf32, #tpu.memory_space<vmem>>, vector<4x1x16xf32>
    %74 = vector.shape_cast %73 : vector<4x1x16xf32> to vector<4x16xf32>
    %c0_91 = arith.constant 0 : index
    %c32 = arith.constant 32 : index
    %75 = vector.load %arg6[%c0_91, %c32] : memref<4x256xf32, #tpu.memory_space<vmem>>, vector<4x16xf32>
    tpu.vector_store %arg6[%c0_91, %c32], %74 {strides = array<i32>} : memref<4x256xf32, #tpu.memory_space<vmem>>, vector<4x16xf32>,
    %c0_92 = arith.constant 0 : index
    %c3_93 = arith.constant 3 : index
    %c0_94 = arith.constant 0 : index
    %76 = vector.load %arg5[%c0_92, %c3_93, %c0_94] : memref<4x16x16xf32, #tpu.memory_space<vmem>>, vector<4x1x16xf32>
    %77 = vector.shape_cast %76 : vector<4x1x16xf32> to vector<4x16xf32>
    %c0_95 = arith.constant 0 : index
    %c48 = arith.constant 48 : index
    %78 = vector.load %arg6[%c0_95, %c48] : memref<4x256xf32, #tpu.memory_space<vmem>>, vector<4x16xf32>
    tpu.vector_store %arg6[%c0_95, %c48], %77 {strides = array<i32>} : memref<4x256xf32, #tpu.memory_space<vmem>>, vector<4x16xf32>,
    %c0_96 = arith.constant 0 : index
    %c4_97 = arith.constant 4 : index
    %c0_98 = arith.constant 0 : index
    %79 = vector.load %arg5[%c0_96, %c4_97, %c0_98] : memref<4x16x16xf32, #tpu.memory_space<vmem>>, vector<4x1x16xf32>
    %80 = vector.shape_cast %79 : vector<4x1x16xf32> to vector<4x16xf32>
    %c0_99 = arith.constant 0 : index
    %c64 = arith.constant 64 : index
    %81 = vector.load %arg6[%c0_99, %c64] : memref<4x256xf32, #tpu.memory_space<vmem>>, vector<4x16xf32>
    tpu.vector_store %arg6[%c0_99, %c64], %80 {strides = array<i32>} : memref<4x256xf32, #tpu.memory_space<vmem>>, vector<4x16xf32>,
    %c0_100 = arith.constant 0 : index
    %c5_101 = arith.constant 5 : index
    %c0_102 = arith.constant 0 : index
    %82 = vector.load %arg5[%c0_100, %c5_101, %c0_102] : memref<4x16x16xf32, #tpu.memory_space<vmem>>, vector<4x1x16xf32>
    %83 = vector.shape_cast %82 : vector<4x1x16xf32> to vector<4x16xf32>
    %c0_103 = arith.constant 0 : index
    %c80 = arith.constant 80 : index
    %84 = vector.load %arg6[%c0_103, %c80] : memref<4x256xf32, #tpu.memory_space<vmem>>, vector<4x16xf32>
    tpu.vector_store %arg6[%c0_103, %c80], %83 {strides = array<i32>} : memref<4x256xf32, #tpu.memory_space<vmem>>, vector<4x16xf32>,
    %c0_104 = arith.constant 0 : index
    %c6_105 = arith.constant 6 : index
    %c0_106 = arith.constant 0 : index
    %85 = vector.load %arg5[%c0_104, %c6_105, %c0_106] : memref<4x16x16xf32, #tpu.memory_space<vmem>>, vector<4x1x16xf32>
    %86 = vector.shape_cast %85 : vector<4x1x16xf32> to vector<4x16xf32>
    %c0_107 = arith.constant 0 : index
    %c96 = arith.constant 96 : index
    %87 = vector.load %arg6[%c0_107, %c96] : memref<4x256xf32, #tpu.memory_space<vmem>>, vector<4x16xf32>
    tpu.vector_store %arg6[%c0_107, %c96], %86 {strides = array<i32>} : memref<4x256xf32, #tpu.memory_space<vmem>>, vector<4x16xf32>,
    %c0_108 = arith.constant 0 : index
    %c7_109 = arith.constant 7 : index
    %c0_110 = arith.constant 0 : index
    %88 = vector.load %arg5[%c0_108, %c7_109, %c0_110] : memref<4x16x16xf32, #tpu.memory_space<vmem>>, vector<4x1x16xf32>
    %89 = vector.shape_cast %88 : vector<4x1x16xf32> to vector<4x16xf32>
    %c0_111 = arith.constant 0 : index
    %c112 = arith.constant 112 : index
    %90 = vector.load %arg6[%c0_111, %c112] : memref<4x256xf32, #tpu.memory_space<vmem>>, vector<4x16xf32>
    tpu.vector_store %arg6[%c0_111, %c112], %89 {strides = array<i32>} : memref<4x256xf32, #tpu.memory_space<vmem>>, vector<4x16xf32>,
    %c0_112 = arith.constant 0 : index
    %c8_113 = arith.constant 8 : index
    %c0_114 = arith.constant 0 : index
    %91 = vector.load %arg5[%c0_112, %c8_113, %c0_114] : memref<4x16x16xf32, #tpu.memory_space<vmem>>, vector<4x1x16xf32>
    %92 = vector.shape_cast %91 : vector<4x1x16xf32> to vector<4x16xf32>
    %c0_115 = arith.constant 0 : index
    %c128 = arith.constant 128 : index
    %93 = vector.load %arg6[%c0_115, %c128] : memref<4x256xf32, #tpu.memory_space<vmem>>, vector<4x16xf32>
    tpu.vector_store %arg6[%c0_115, %c128], %92 {strides = array<i32>} : memref<4x256xf32, #tpu.memory_space<vmem>>, vector<4x16xf32>,
    %c0_116 = arith.constant 0 : index
    %c9 = arith.constant 9 : index
    %c0_117 = arith.constant 0 : index
    %94 = vector.load %arg5[%c0_116, %c9, %c0_117] : memref<4x16x16xf32, #tpu.memory_space<vmem>>, vector<4x1x16xf32>
    %95 = vector.shape_cast %94 : vector<4x1x16xf32> to vector<4x16xf32>
    %c0_118 = arith.constant 0 : index
    %c144 = arith.constant 144 : index
    %96 = vector.load %arg6[%c0_118, %c144] : memref<4x256xf32, #tpu.memory_space<vmem>>, vector<4x16xf32>
    tpu.vector_store %arg6[%c0_118, %c144], %95 {strides = array<i32>} : memref<4x256xf32, #tpu.memory_space<vmem>>, vector<4x16xf32>,
    %c0_119 = arith.constant 0 : index
    %c10 = arith.constant 10 : index
    %c0_120 = arith.constant 0 : index
    %97 = vector.load %arg5[%c0_119, %c10, %c0_120] : memref<4x16x16xf32, #tpu.memory_space<vmem>>, vector<4x1x16xf32>
    %98 = vector.shape_cast %97 : vector<4x1x16xf32> to vector<4x16xf32>
    %c0_121 = arith.constant 0 : index
    %c160 = arith.constant 160 : index
    %99 = vector.load %arg6[%c0_121, %c160] : memref<4x256xf32, #tpu.memory_space<vmem>>, vector<4x16xf32>
    tpu.vector_store %arg6[%c0_121, %c160], %98 {strides = array<i32>} : memref<4x256xf32, #tpu.memory_space<vmem>>, vector<4x16xf32>,
    %c0_122 = arith.constant 0 : index
    %c11 = arith.constant 11 : index
    %c0_123 = arith.constant 0 : index
    %100 = vector.load %arg5[%c0_122, %c11, %c0_123] : memref<4x16x16xf32, #tpu.memory_space<vmem>>, vector<4x1x16xf32>
    %101 = vector.shape_cast %100 : vector<4x1x16xf32> to vector<4x16xf32>
    %c0_124 = arith.constant 0 : index
    %c176 = arith.constant 176 : index
    %102 = vector.load %arg6[%c0_124, %c176] : memref<4x256xf32, #tpu.memory_space<vmem>>, vector<4x16xf32>
    tpu.vector_store %arg6[%c0_124, %c176], %101 {strides = array<i32>} : memref<4x256xf32, #tpu.memory_space<vmem>>, vector<4x16xf32>,
    %c0_125 = arith.constant 0 : index
    %c12 = arith.constant 12 : index
    %c0_126 = arith.constant 0 : index
    %103 = vector.load %arg5[%c0_125, %c12, %c0_126] : memref<4x16x16xf32, #tpu.memory_space<vmem>>, vector<4x1x16xf32>
    %104 = vector.shape_cast %103 : vector<4x1x16xf32> to vector<4x16xf32>
    %c0_127 = arith.constant 0 : index
    %c192 = arith.constant 192 : index
    %105 = vector.load %arg6[%c0_127, %c192] : memref<4x256xf32, #tpu.memory_space<vmem>>, vector<4x16xf32>
    tpu.vector_store %arg6[%c0_127, %c192], %104 {strides = array<i32>} : memref<4x256xf32, #tpu.memory_space<vmem>>, vector<4x16xf32>,
    %c0_128 = arith.constant 0 : index
    %c13 = arith.constant 13 : index
    %c0_129 = arith.constant 0 : index
    %106 = vector.load %arg5[%c0_128, %c13, %c0_129] : memref<4x16x16xf32, #tpu.memory_space<vmem>>, vector<4x1x16xf32>
    %107 = vector.shape_cast %106 : vector<4x1x16xf32> to vector<4x16xf32>
    %c0_130 = arith.constant 0 : index
    %c208 = arith.constant 208 : index
    %108 = vector.load %arg6[%c0_130, %c208] : memref<4x256xf32, #tpu.memory_space<vmem>>, vector<4x16xf32>
    tpu.vector_store %arg6[%c0_130, %c208], %107 {strides = array<i32>} : memref<4x256xf32, #tpu.memory_space<vmem>>, vector<4x16xf32>,
    %c0_131 = arith.constant 0 : index
    %c14 = arith.constant 14 : index
    %c0_132 = arith.constant 0 : index
    %109 = vector.load %arg5[%c0_131, %c14, %c0_132] : memref<4x16x16xf32, #tpu.memory_space<vmem>>, vector<4x1x16xf32>
    %110 = vector.shape_cast %109 : vector<4x1x16xf32> to vector<4x16xf32>
    %c0_133 = arith.constant 0 : index
    %c224 = arith.constant 224 : index
    %111 = vector.load %arg6[%c0_133, %c224] : memref<4x256xf32, #tpu.memory_space<vmem>>, vector<4x16xf32>
    tpu.vector_store %arg6[%c0_133, %c224], %110 {strides = array<i32>} : memref<4x256xf32, #tpu.memory_space<vmem>>, vector<4x16xf32>,
    %c0_134 = arith.constant 0 : index
    %c15 = arith.constant 15 : index
    %c0_135 = arith.constant 0 : index
    %112 = vector.load %arg5[%c0_134, %c15, %c0_135] : memref<4x16x16xf32, #tpu.memory_space<vmem>>, vector<4x1x16xf32>
    %113 = vector.shape_cast %112 : vector<4x1x16xf32> to vector<4x16xf32>
    %c0_136 = arith.constant 0 : index
    %c240 = arith.constant 240 : index
    %114 = vector.load %arg6[%c0_136, %c240] : memref<4x256xf32, #tpu.memory_space<vmem>>, vector<4x16xf32>
    tpu.vector_store %arg6[%c0_136, %c240], %113 {strides = array<i32>} : memref<4x256xf32, #tpu.memory_space<vmem>>, vector<4x16xf32>,
    %c0_137 = arith.constant 0 : index
    %c0_138 = arith.constant 0 : index
    %115 = vector.load %arg3[%c0_137, %c0_138] : memref<8x4xf32, #tpu.memory_space<vmem>>, vector<8x4xf32>
    %c0_139 = arith.constant 0 : index
    %c0_140 = arith.constant 0 : index
    %116 = vector.load %arg6[%c0_139, %c0_140] : memref<4x256xf32, #tpu.memory_space<vmem>>, vector<4x256xf32>
    %cst_141 = arith.constant dense<0.000000e+00> : vector<8x256xf32>
    %117 = tpu.matmul %115, %116, %cst_141 {dimension_numbers = #tpu.dot_dimension_numbers<[1], [0], [0], [1], [0, 0, 1, 1], [], []>} : vector<8x4xf32>, vector<4x256xf32>, vector<8x256xf32> -> vector<8x256xf32>
    %c0_142 = arith.constant 0 : index
    %c0_143 = arith.constant 0 : index
    %c0_144 = arith.constant 0 : index
    %118 = vector.load %arg4[%c0_142, %c0_143, %c0_144] : memref<1x8x256xf32, #tpu.memory_space<vmem>>, vector<1x8x256xf32>
    %119 = vector.shape_cast %118 : vector<1x8x256xf32> to vector<8x256xf32>
    %120 = vector.shape_cast %117 : vector<8x256xf32> to vector<1x8x256xf32>
    tpu.vector_store %arg4[%c0_142, %c0_143, %c0_144], %120 {strides = array<i32>} : memref<1x8x256xf32, #tpu.memory_space<vmem>>, vector<1x8x256xf32>,
    return
  }
  func.func @transform_0(%arg0: i32) -> (i32, i32, i32, i32) {
    %c0_i32 = arith.constant 0 : i32
    %c0_i32_0 = arith.constant 0 : i32
    %c0_i32_1 = arith.constant 0 : i32
    %c0_i32_2 = arith.constant 0 : i32
    return %arg0, %c0_i32, %c0_i32_0, %c0_i32_1 : i32, i32, i32, i32
  }
  func.func @transform_1(%arg0: i32) -> (i32, i32, i32, i32) {
    %c0_i32 = arith.constant 0 : i32
    %c0_i32_0 = arith.constant 0 : i32
    %c0_i32_1 = arith.constant 0 : i32
    %c0_i32_2 = arith.constant 0 : i32
    %c0_i32_3 = arith.constant 0 : i32
    return %c0_i32, %c0_i32_0, %c0_i32_1, %c0_i32_2 : i32, i32, i32, i32
  }
  func.func @transform_2(%arg0: i32) -> (i32, i32) {
    %c0_i32 = arith.constant 0 : i32
    %c0_i32_0 = arith.constant 0 : i32
    %c0_i32_1 = arith.constant 0 : i32
    return %c0_i32, %c0_i32_0 : i32, i32
  }
  func.func @transform_3(%arg0: i32) -> (i32, i32, i32) {
    %c0_i32 = arith.constant 0 : i32
    %c0_i32_0 = arith.constant 0 : i32
    %c0_i32_1 = arith.constant 0 : i32
    return %arg0, %c0_i32, %c0_i32_0 : i32, i32, i32
  }
}

</mosaic_0001>

<llo_original>
// kernel: tpu_custom_call.1
$region0: #{tpu_custom_call.1}
  #allocation0 [shape = 'u32[]', space=smem, size = 0x4, offset = 0x4, fixed_abs, tag = 'smem constant byte address 0x4 - core index']
  #allocation1 [shape = 'u32[144,128]{1,0:T(1,128)}', space=vmem, size = 0x12000, scoped, tag = 'internal scratch']
  #allocation2 [shape = 'f32[4,16,16]{2,1,0:T(8,128)}', space=vmem, size = 0x8000, scoped, tag = 'scratch operand']
  #allocation3 [shape = 'f32[4,256]{1,0:T(4,128)}', space=vmem, size = 0x1000, scoped, tag = 'scratch operand']
  #allocation4 [shape = 'f32[4,18,18]{2,1,0:T(8,128)}', space=vmem, size = 0xc000, scoped, tag = 'scratch operand']
  %s0 = inlined_call_operand.hbm [shape: f32[2,4,16,16], index: 0, kind: input, shape index: {}]
  %s1 = inlined_call_operand.vmem [shape: f32[9,4,1,1], index: 1, kind: input, shape index: {}]
  %s2 = inlined_call_operand.vmem [shape: f32[8,4], index: 2, kind: input, shape index: {}]
  %s3 = inlined_call_operand.hbm [shape: f32[2,8,256], index: 3, kind: output, shape index: {}]
  %s4 = sld [smem:[#allocation0]]
  $region49: #{tpu_custom_call.1} parent=0
    _
  %s6 = ssub.s32 1, %s4
  %s7 = scalar_select 0, %s6, %s4
  $region1: #{tpu_custom_call.1} parent=0
    #allocation5 [shape = 'u8[65536]{0}', space=vmem, size = 0x10000, scoped, tag = 'input window, operand 0']
    #allocation6 [shape = 's32[2]{0}', space=sflag, size = 0x8, scoped, tag = 'scoped memory for tpu_custom_call.1']
    #allocation7 [shape = 's32[2]{0}', space=sflag, size = 0x8, scoped, tag = 'scoped memory for tpu_custom_call.1']
    #allocation8 [shape = 'u8[16384]{0}', space=vmem, size = 0x4000, scoped, tag = 'output window, operand 0']
    %8 = vsyncpa [#allocation6], 0
    %s9 = scalar_lea.sflag [#allocation6], 1
    %10 = vsyncpa %s9, 0
    %11 = vsyncpa [#allocation7], 0
    %s12 = scalar_lea.sflag [#allocation7], 1
    %13 = vsyncpa %s12, 0
    loop: start=0, step=1, limit=4
    $region2: #{tpu_custom_call.1} parent=1 // loop_pre_header
      _
    $region3: #{tpu_custom_call.1} parent=1 // loop_header
      %s15 = sphi 0, %s19
      %p16 = scmp.ge.s32.totalorder %s15, 4
      %s25 = sphi 0, %s27
      %s28 = sphi 0, %s25
      %s29 = sphi 0, %s28
      %s45 = sphi 0, %s29
      %s49 = sphi 0, %s49
      %s51 = sphi 0, %s49
      %s52 = sphi 0, %s51
      %s66 = sphi 0, %s52
      %s70 = sphi 0, %s70
      %s72 = sphi 0, %s70
      %s73 = sphi 0, %s72
      %s87 = sphi 0, %s73
      %s93 = sphi 0, %s95
      %s96 = sphi 0, %s93
      %s97 = sphi 0, %s96
      %s113 = sphi 0, %s97
    $region4: #{tpu_custom_call.1} parent=1 // loop_header_branch
      %18 = sbr.rel (%p16) target = $region8
    $region5: #{tpu_custom_call.1} parent=1 // loop_body
      %s20 = ssub.s32 %s15, 1
      %s21 = ssub.s32 %s15, 2
      %s22 = sadd.s32 %s15, 1
      %s23 = ssub.s32 %s15, %s22
      %p24 = scmp.eq.s32.totalorder %s23, 0
      %s26 = sadd.s32 %s25, 1
      %s27 = scalar_select %p24, %s25, %s26
      %p30 = pneg %p24
      %p31 = scmp.eq.s32.totalorder %s15, 1
      %p32 = por %p30, %p31
      %p33 = scmp.ne.s32.totalorder %s25, %s28
      %p34 = scmp.eq.s32.totalorder %s15, 0
      %p35 = por %p33, %p34
      %p36 = scmp.ne.s32.totalorder %s25, %s28
      %p37 = scmp.eq.s32.totalorder %s20, 1
      %p38 = por %p36, %p37
      %p39 = scmp.ne.s32.totalorder %s28, %s29
      %p40 = scmp.eq.s32.totalorder %s20, 0
      %p41 = por %p39, %p40
      %p42 = scmp.ne.s32.totalorder %s28, %s29
      %p43 = scmp.eq.s32.totalorder %s21, 1
      %p44 = por %p42, %p43
      %p46 = scmp.ne.s32.totalorder %s29, %s45
      %p47 = scmp.eq.s32.totalorder %s21, 0
      %p48 = por %p46, %p47
      %s50 = sadd.s32 %s49, 1
      %p53 = scmp.eq.s32.totalorder %s15, 1
      %p54 = scmp.ne.s32.totalorder %s49, %s51
      %p55 = scmp.eq.s32.totalorder %s15, 0
      %p56 = por %p54, %p55
      %p57 = scmp.ne.s32.totalorder %s49, %s51
      %p58 = scmp.eq.s32.totalorder %s20, 1
      %p59 = por %p57, %p58
      %p60 = scmp.ne.s32.totalorder %s51, %s52
      %p61 = scmp.eq.s32.totalorder %s20, 0
      %p62 = por %p60, %p61
      %p63 = scmp.ne.s32.totalorder %s51, %s52
      %p64 = scmp.eq.s32.totalorder %s21, 1
      %p65 = por %p63, %p64
      %p67 = scmp.ne.s32.totalorder %s52, %s66
      %p68 = scmp.eq.s32.totalorder %s21, 0
      %p69 = por %p67, %p68
      %s71 = sadd.s32 %s70, 1
      %p74 = scmp.eq.s32.totalorder %s15, 1
      %p75 = scmp.ne.s32.totalorder %s70, %s72
      %p76 = scmp.eq.s32.totalorder %s15, 0
      %p77 = por %p75, %p76
      %p78 = scmp.ne.s32.totalorder %s70, %s72
      %p79 = scmp.eq.s32.totalorder %s20, 1
      %p80 = por %p78, %p79
      %p81 = scmp.ne.s32.totalorder %s72, %s73
      %p82 = scmp.eq.s32.totalorder %s20, 0
      %p83 = por %p81, %p82
      %p84 = scmp.ne.s32.totalorder %s72, %s73
      %p85 = scmp.eq.s32.totalorder %s21, 1
      %p86 = por %p84, %p85
      %p88 = scmp.ne.s32.totalorder %s73, %s87
      %p89 = scmp.eq.s32.totalorder %s21, 0
      %p90 = por %p88, %p89
      %s91 = ssub.s32 %s15, %s22
      %p92 = scmp.eq.s32.totalorder %s91, 0
      %s94 = sadd.s32 %s93, 1
      %s95 = scalar_select %p92, %s93, %s94
      %p98 = pneg %p92
      %p99 = scmp.eq.s32.totalorder %s15, 1
      %p100 = por %p98, %p99
      %p101 = scmp.ne.s32.totalorder %s93, %s96
      %p102 = scmp.eq.s32.totalorder %s15, 0
      %p103 = por %p101, %p102
      %p104 = scmp.ne.s32.totalorder %s93, %s96
      %p105 = scmp.eq.s32.totalorder %s20, 1
      %p106 = por %p104, %p105
      %p107 = scmp.ne.s32.totalorder %s96, %s97
      %p108 = scmp.eq.s32.totalorder %s20, 0
      %p109 = por %p107, %p108
      %p110 = scmp.ne.s32.totalorder %s96, %s97
      %p111 = scmp.eq.s32.totalorder %s21, 1
      %p112 = por %p110, %p111
      %p114 = scmp.ne.s32.totalorder %s97, %s113
      %p115 = scmp.eq.s32.totalorder %s21, 0
      %p116 = por %p114, %p115
      %p117 = scmp.le.s32.totalorder 1, %s15
      %p118 = scmp.lt.s32.totalorder %s15, 3
      %p119 = pnand %p117, %p118
      %p120 = pneg %p119
      // Predicated region
      $region9: #{tpu_custom_call.1} parent=5 // pred_check
        _
      $region10: #{tpu_custom_call.1} parent=5 // pred_check_branch
        %122 = sbr.rel (%p119) target = $region12
      $region11: #{tpu_custom_call.1} parent=5 // pred_region
        %s123 = ssub.s32 %s15, 1
        // Predicated region
        $region13: #{tpu_custom_call.1} parent=11 // pred_check
          %p124 = pneg %p62
        $region14: #{tpu_custom_call.1} parent=11 // pred_check_branch
          %126 = sbr.rel (%p124) target = $region16
        $region15: #{tpu_custom_call.1} parent=11 // pred_region
          _
        $region16: #{tpu_custom_call.1} parent=11 // pred_fallthru
          _
        // Predicated region
        $region17: #{tpu_custom_call.1} parent=11 // pred_check
          %p127 = pneg %p83
        $region18: #{tpu_custom_call.1} parent=11 // pred_check_branch
          %129 = sbr.rel (%p127) target = $region20
        $region19: #{tpu_custom_call.1} parent=11 // pred_region
          _
        $region20: #{tpu_custom_call.1} parent=11 // pred_fallthru
          _
      $region12: #{tpu_custom_call.1} parent=5 // pred_fallthru
        _
      %p130 = scmp.lt.s32.totalorder %s15, 2
      // Predicated region
      $region21: #{tpu_custom_call.1} parent=5 // pred_check
        %p131 = pneg %p130
      $region22: #{tpu_custom_call.1} parent=5 // pred_check_branch
        %133 = sbr.rel (%p131) target = $region24
      $region23: #{tpu_custom_call.1} parent=5 // pred_region
        // Predicated region
        $region25: #{tpu_custom_call.1} parent=23 // pred_check
          %p134 = pneg %p35
        $region26: #{tpu_custom_call.1} parent=23 // pred_check_branch
          %136 = sbr.rel (%p134) target = $region28
        $region27: #{tpu_custom_call.1} parent=23 // pred_region
          %s137 = sand.u32 %s25, 1
          %s138 = scalar_lea.sflag [#allocation6], %s137
          %s139 = sand.u32 %s25, 1
          %s140 = smul.addr %s139, 64
          %s141 = scalar_lea.vmem [#allocation5], %s140
          %s143 = ssub.s32 1024, 1024
          %144 = vsyncadd %s138, %s143
          %s145 = smul.addr %s15, 8
          %s146 = smul.addr %s145, 128
          %s147 = scalar_lea.hbm %s0, %s146
          %s148 = sshll.u32 %s141, 4
          %s149 = int_to_ptr.vmem [resolvable:$true] %s148
          %154 = dma.hbm_to_vmem [thread:$0]  %s147, 1024, %s149, %s138, 128, 128, 8
        $region28: #{tpu_custom_call.1} parent=23 // pred_fallthru
          _
      $region24: #{tpu_custom_call.1} parent=5 // pred_fallthru
        _
      %p155 = scmp.le.s32.totalorder 1, %s15
      %p156 = scmp.lt.s32.totalorder %s15, 3
      %p157 = pnand %p155, %p156
      %p158 = pneg %p157
      // Predicated region
      $region29: #{tpu_custom_call.1} parent=5 // pred_check
        _
      $region30: #{tpu_custom_call.1} parent=5 // pred_check_branch
        %160 = sbr.rel (%p157) target = $region32
      $region31: #{tpu_custom_call.1} parent=5 // pred_region
        %s161 = ssub.s32 %s15, 1
        %s162 = sand.u32 %s28, 1
        %s163 = scalar_lea.sflag [#allocation6], %s162
        %s164 = sand.u32 %s28, 1
        %s165 = smul.addr %s164, 64
        %s166 = scalar_lea.vmem [#allocation5], %s165
        // Predicated region
        $region33: #{tpu_custom_call.1} parent=31 // pred_check
          %p167 = pneg %p41
        $region34: #{tpu_custom_call.1} parent=31 // pred_check_branch
          %169 = sbr.rel (%p167) target = $region36
        $region35: #{tpu_custom_call.1} parent=31 // pred_region
          %170 = dma.done %s163, 1024
        $region36: #{tpu_custom_call.1} parent=31 // pred_fallthru
          _
        %s171 = sand.u32 %s28, 1
        %s172 = scalar_lea.sflag [#allocation6], %s171
        %s173 = sand.u32 %s28, 1
        %s174 = smul.addr %s173, 64
        %s175 = scalar_lea.vmem [#allocation5], %s174
        %p176 = pneg %p41
        %p177 = pneg %p38
        %p178 = pneg %p62
        %p179 = pneg %p59
        %p180 = pneg %p83
        %p181 = pneg %p80
        %p182 = pneg %p109
        %p183 = pneg %p106
        %s184 = sand.u32 %s96, 1
        %s185 = scalar_lea.sflag [#allocation7], %s184
        %s186 = sand.u32 %s96, 1
        %s187 = smul.addr %s186, 16
        %s188 = scalar_lea.vmem [#allocation8], %s187
        %vm189 = vcmask 139264
        %190 = vst.msk [vmem:[#allocation4] sm:$0x1] %vm189, 0.0
        %191 = vst.msk [vmem:[#allocation4 + $0x18] sm:$0x1] %vm189, 0.0
        %192 = vst.msk [vmem:[#allocation4 + $0x30] sm:$0x1] %vm189, 0.0
        %193 = vst.msk [vmem:[#allocation4 + $0x48] sm:$0x1] %vm189, 0.0
        %194 = vst.msk [vmem:[#allocation4 + $0x11] sm:$0x1] %vm189, 0.0
        %195 = vst.msk [vmem:[#allocation4 + $0x29] sm:$0x1] %vm189, 0.0
        %196 = vst.msk [vmem:[#allocation4 + $0x41] sm:$0x1] %vm189, 0.0
        %197 = vst.msk [vmem:[#allocation4 + $0x59] sm:$0x1] %vm189, 0.0
        %vm198 = vcmask 7168
        %199 = vst.msk [vmem:[#allocation4 + $0x1] sm:$0xff] %vm198, 0.0
        %200 = vst.msk [vmem:[#allocation4 + $0x9] sm:$0xff] %vm198, 0.0
        %201 = vst.msk [vmem:[#allocation4 + $0x19] sm:$0xff] %vm198, 0.0
        %202 = vst.msk [vmem:[#allocation4 + $0x21] sm:$0xff] %vm198, 0.0
        %203 = vst.msk [vmem:[#allocation4 + $0x31] sm:$0xff] %vm198, 0.0
        %204 = vst.msk [vmem:[#allocation4 + $0x39] sm:$0xff] %vm198, 0.0
        %205 = vst.msk [vmem:[#allocation4 + $0x49] sm:$0xff] %vm198, 0.0
        %206 = vst.msk [vmem:[#allocation4 + $0x51] sm:$0xff] %vm198, 0.0
        %vm207 = vcmask 146568
        %208 = vst.msk [vmem:[#allocation4 + $0x1] sm:$0xff] %vm207, 0.0
        %209 = vst.msk [vmem:[#allocation4 + $0x9] sm:$0xff] %vm207, 0.0
        %210 = vst.msk [vmem:[#allocation4 + $0x19] sm:$0xff] %vm207, 0.0
        %211 = vst.msk [vmem:[#allocation4 + $0x21] sm:$0xff] %vm207, 0.0
        %212 = vst.msk [vmem:[#allocation4 + $0x31] sm:$0xff] %vm207, 0.0
        %213 = vst.msk [vmem:[#allocation4 + $0x39] sm:$0xff] %vm207, 0.0
        %214 = vst.msk [vmem:[#allocation4 + $0x49] sm:$0xff] %vm207, 0.0
        %215 = vst.msk [vmem:[#allocation4 + $0x51] sm:$0xff] %vm207, 0.0
        %v216 = vld [vmem:[%s166] sm:$0xff]
        %v217 = vld [vmem:[%s166 + $0x8] sm:$0xff]
        %v218 = vld [vmem:[%s166 + $0x10] sm:$0xff]
        %v219 = vld [vmem:[%s166 + $0x18] sm:$0xff]
        %v220 = vld [vmem:[%s166 + $0x20] sm:$0xff]
        %v221 = vld [vmem:[%s166 + $0x28] sm:$0xff]
        %v222 = vld [vmem:[%s166 + $0x30] sm:$0xff]
        %v223 = vld [vmem:[%s166 + $0x38] sm:$0xff]
        %232 = vrot.lane.b32.xlu0 %v216, 1
        %v233 = vpop.permute.xlu0 %232
        %234 = vrot.lane.b32.xlu0 %v217, 1
        %v235 = vpop.permute.xlu0 %234
        %236 = vrot.lane.b32.xlu0 %v218, 1
        %v237 = vpop.permute.xlu0 %236
        %238 = vrot.lane.b32.xlu0 %v219, 1
        %v239 = vpop.permute.xlu0 %238
        %240 = vrot.lane.b32.xlu0 %v220, 1
        %v241 = vpop.permute.xlu0 %240
        %242 = vrot.lane.b32.xlu0 %v221, 1
        %v243 = vpop.permute.xlu0 %242
        %244 = vrot.lane.b32.xlu0 %v222, 1
        %v245 = vpop.permute.xlu0 %244
        %246 = vrot.lane.b32.xlu0 %v223, 1
        %v247 = vpop.permute.xlu0 %246
        %vm256 = vcmask 138248
        %257 = vst.msk [vmem:[#allocation4 + $0x1] sm:$0xff] %vm256, %v233
        %258 = vst.msk [vmem:[#allocation4 + $0x9] sm:$0xff] %vm256, %v235
        %259 = vst.msk [vmem:[#allocation4 + $0x19] sm:$0xff] %vm256, %v237
        %260 = vst.msk [vmem:[#allocation4 + $0x21] sm:$0xff] %vm256, %v239
        %261 = vst.msk [vmem:[#allocation4 + $0x31] sm:$0xff] %vm256, %v241
        %262 = vst.msk [vmem:[#allocation4 + $0x39] sm:$0xff] %vm256, %v243
        %263 = vst.msk [vmem:[#allocation4 + $0x49] sm:$0xff] %vm256, %v245
        %264 = vst.msk [vmem:[#allocation4 + $0x51] sm:$0xff] %vm256, %v247
        %v265 = vld [vmem:[#allocation4] sm:$0xff]
        %v266 = vld [vmem:[#allocation4 + $0x8] sm:$0xff]
        %v267 = vld [vmem:[#allocation4 + $0x18] sm:$0xff]
        %v268 = vld [vmem:[#allocation4 + $0x20] sm:$0xff]
        %v269 = vld [vmem:[#allocation4 + $0x30] sm:$0xff]
        %v270 = vld [vmem:[#allocation4 + $0x38] sm:$0xff]
        %v271 = vld [vmem:[#allocation4 + $0x48] sm:$0xff]
        %v272 = vld [vmem:[#allocation4 + $0x50] sm:$0xff]
        %v273 = vld [vmem:[%s1] sm:$0x1]
        %v274 = vld [vmem:[%s1 + $0x1] sm:$0x1]
        %v275 = vld [vmem:[%s1 + $0x2] sm:$0x1]
        %v276 = vld [vmem:[%s1 + $0x3] sm:$0x1]
        %v281 = vlaneseq
        %v282 = vshrl.u32 %v281, 7
        %v283 = vsub.s32 0, %v282
        %v284 = vrot.slane %v273, %v283
        %v285 = vlaneseq
        %v286 = vshrl.u32 %v285, 7
        %v287 = vsub.s32 0, %v286
        %v288 = vrot.slane %v274, %v287
        %v289 = vlaneseq
        %v290 = vshrl.u32 %v289, 7
        %v291 = vsub.s32 0, %v290
        %v292 = vrot.slane %v275, %v291
        %v293 = vlaneseq
        %v294 = vshrl.u32 %v293, 7
        %v295 = vsub.s32 0, %v294
        %v296 = vrot.slane %v276, %v295
        %297 = vset.pattern.permute.xlu0 0
        %298 = vperm.xlu0 %297, %v284
        %v299 = vpop.permute.xlu0 %298
        %301 = vset.pattern.permute.xlu0 0
        %302 = vperm.xlu0 %301, %v288
        %v303 = vpop.permute.xlu0 %302
        %305 = vset.pattern.permute.xlu0 0
        %306 = vperm.xlu0 %305, %v292
        %v307 = vpop.permute.xlu0 %306
        %309 = vset.pattern.permute.xlu0 0
        %310 = vperm.xlu0 %309, %v296
        %v311 = vpop.permute.xlu0 %310
        %v313 = vmul.f32 %v265, %v299
        %v314 = vmul.f32 %v266, %v299
        %v315 = vmul.f32 %v267, %v303
        %v316 = vmul.f32 %v268, %v303
        %v317 = vmul.f32 %v269, %v307
        %v318 = vmul.f32 %v270, %v307
        %v319 = vmul.f32 %v271, %v311
        %v320 = vmul.f32 %v272, %v311
        %v321 = vadd.f32 %v313, 0.0
        %v322 = vadd.f32 %v314, 0.0
        %v323 = vadd.f32 %v315, 0.0
        %v324 = vadd.f32 %v316, 0.0
        %v325 = vadd.f32 %v317, 0.0
        %v326 = vadd.f32 %v318, 0.0
        %v327 = vadd.f32 %v319, 0.0
        %v328 = vadd.f32 %v320, 0.0
        %s329 = scalar_lea.vmem %s1, 4
        %v330 = vld [vmem:[%s329] sm:$0x1]
        %v331 = vld [vmem:[%s329 + $0x1] sm:$0x1]
        %v332 = vld [vmem:[%s329 + $0x2] sm:$0x1]
        %v333 = vld [vmem:[%s329 + $0x3] sm:$0x1]
        %v338 = vlaneseq
        %v339 = vshrl.u32 %v338, 7
        %v340 = vsub.s32 0, %v339
        %v341 = vrot.slane %v330, %v340
        %v342 = vlaneseq
        %v343 = vshrl.u32 %v342, 7
        %v344 = vsub.s32 0, %v343
        %v345 = vrot.slane %v331, %v344
        %v346 = vlaneseq
        %v347 = vshrl.u32 %v346, 7
        %v348 = vsub.s32 0, %v347
        %v349 = vrot.slane %v332, %v348
        %v350 = vlaneseq
        %v351 = vshrl.u32 %v350, 7
        %v352 = vsub.s32 0, %v351
        %v353 = vrot.slane %v333, %v352
        %354 = vset.pattern.permute.xlu0 0
        %355 = vperm.xlu0 %354, %v341
        %v356 = vpop.permute.xlu0 %355
        %358 = vset.pattern.permute.xlu0 0
        %359 = vperm.xlu0 %358, %v345
        %v360 = vpop.permute.xlu0 %359
        %362 = vset.pattern.permute.xlu0 0
        %363 = vperm.xlu0 %362, %v349
        %v364 = vpop.permute.xlu0 %363
        %366 = vset.pattern.permute.xlu0 0
        %367 = vperm.xlu0 %366, %v353
        %v368 = vpop.permute.xlu0 %367
        %v370 = vmul.f32 %v265, %v356
        %v371 = vmul.f32 %v266, %v356
        %v372 = vmul.f32 %v267, %v360
        %v373 = vmul.f32 %v268, %v360
        %v374 = vmul.f32 %v269, %v364
        %v375 = vmul.f32 %v270, %v364
        %v376 = vmul.f32 %v271, %v368
        %v377 = vmul.f32 %v272, %v368
        %386 = vrot.lane.b32.xlu0 %v370, 127
        %v387 = vpop.permute.xlu0 %386
        %388 = vrot.lane.b32.xlu0 %v371, 127
        %v389 = vpop.permute.xlu0 %388
        %390 = vrot.lane.b32.xlu0 %v372, 127
        %v391 = vpop.permute.xlu0 %390
        %392 = vrot.lane.b32.xlu0 %v373, 127
        %v393 = vpop.permute.xlu0 %392
        %394 = vrot.lane.b32.xlu0 %v374, 127
        %v395 = vpop.permute.xlu0 %394
        %396 = vrot.lane.b32.xlu0 %v375, 127
        %v397 = vpop.permute.xlu0 %396
        %398 = vrot.lane.b32.xlu0 %v376, 127
        %v399 = vpop.permute.xlu0 %398
        %400 = vrot.lane.b32.xlu0 %v377, 127
        %v401 = vpop.permute.xlu0 %400
        %v410 = vadd.f32 %v321, %v387
        %v411 = vadd.f32 %v322, %v389
        %v412 = vadd.f32 %v323, %v391
        %v413 = vadd.f32 %v324, %v393
        %v414 = vadd.f32 %v325, %v395
        %v415 = vadd.f32 %v326, %v397
        %v416 = vadd.f32 %v327, %v399
        %v417 = vadd.f32 %v328, %v401
        %s418 = scalar_lea.vmem %s1, 8
        %v419 = vld [vmem:[%s418] sm:$0x1]
        %v420 = vld [vmem:[%s418 + $0x1] sm:$0x1]
        %v421 = vld [vmem:[%s418 + $0x2] sm:$0x1]
        %v422 = vld [vmem:[%s418 + $0x3] sm:$0x1]
        %v427 = vlaneseq
        %v428 = vshrl.u32 %v427, 7
        %v429 = vsub.s32 0, %v428
        %v430 = vrot.slane %v419, %v429
        %v431 = vlaneseq
        %v432 = vshrl.u32 %v431, 7
        %v433 = vsub.s32 0, %v432
        %v434 = vrot.slane %v420, %v433
        %v435 = vlaneseq
        %v436 = vshrl.u32 %v435, 7
        %v437 = vsub.s32 0, %v436
        %v438 = vrot.slane %v421, %v437
        %v439 = vlaneseq
        %v440 = vshrl.u32 %v439, 7
        %v441 = vsub.s32 0, %v440
        %v442 = vrot.slane %v422, %v441
        %443 = vset.pattern.permute.xlu0 0
        %444 = vperm.xlu0 %443, %v430
        %v445 = vpop.permute.xlu0 %444
        %447 = vset.pattern.permute.xlu0 0
        %448 = vperm.xlu0 %447, %v434
        %v449 = vpop.permute.xlu0 %448
        %451 = vset.pattern.permute.xlu0 0
        %452 = vperm.xlu0 %451, %v438
        %v453 = vpop.permute.xlu0 %452
        %455 = vset.pattern.permute.xlu0 0
        %456 = vperm.xlu0 %455, %v442
        %v457 = vpop.permute.xlu0 %456
        %v459 = vmul.f32 %v265, %v445
        %v460 = vmul.f32 %v266, %v445
        %v461 = vmul.f32 %v267, %v449
        %v462 = vmul.f32 %v268, %v449
        %v463 = vmul.f32 %v269, %v453
        %v464 = vmul.f32 %v270, %v453
        %v465 = vmul.f32 %v271, %v457
        %v466 = vmul.f32 %v272, %v457
        %475 = vrot.lane.b32.xlu0 %v459, 126
        %v476 = vpop.permute.xlu0 %475
        %477 = vrot.lane.b32.xlu0 %v460, 126
        %v478 = vpop.permute.xlu0 %477
        %479 = vrot.lane.b32.xlu0 %v461, 126
        %v480 = vpop.permute.xlu0 %479
        %481 = vrot.lane.b32.xlu0 %v462, 126
        %v482 = vpop.permute.xlu0 %481
        %483 = vrot.lane.b32.xlu0 %v463, 126
        %v484 = vpop.permute.xlu0 %483
        %485 = vrot.lane.b32.xlu0 %v464, 126
        %v486 = vpop.permute.xlu0 %485
        %487 = vrot.lane.b32.xlu0 %v465, 126
        %v488 = vpop.permute.xlu0 %487
        %489 = vrot.lane.b32.xlu0 %v466, 126
        %v490 = vpop.permute.xlu0 %489
        %v499 = vadd.f32 %v410, %v476
        %v500 = vadd.f32 %v411, %v478
        %v501 = vadd.f32 %v412, %v480
        %v502 = vadd.f32 %v413, %v482
        %v503 = vadd.f32 %v414, %v484
        %v504 = vadd.f32 %v415, %v486
        %v505 = vadd.f32 %v416, %v488
        %v506 = vadd.f32 %v417, %v490
        %v507 = vld [vmem:[#allocation4 + $0x1] sm:$0xff]
        %v508 = vld [vmem:[#allocation4 + $0x9] sm:$0xff]
        %v509 = vld [vmem:[#allocation4 + $0x19] sm:$0xff]
        %v510 = vld [vmem:[#allocation4 + $0x21] sm:$0xff]
        %v511 = vld [vmem:[#allocation4 + $0x31] sm:$0xff]
        %v512 = vld [vmem:[#allocation4 + $0x39] sm:$0xff]
        %v513 = vld [vmem:[#allocation4 + $0x49] sm:$0xff]
        %v514 = vld [vmem:[#allocation4 + $0x51] sm:$0xff]
        %s515 = scalar_lea.vmem %s1, 12
        %v516 = vld [vmem:[%s515] sm:$0x1]
        %v517 = vld [vmem:[%s515 + $0x1] sm:$0x1]
        %v518 = vld [vmem:[%s515 + $0x2] sm:$0x1]
        %v519 = vld [vmem:[%s515 + $0x3] sm:$0x1]
        %v524 = vlaneseq
        %v525 = vshrl.u32 %v524, 7
        %v526 = vsub.s32 0, %v525
        %v527 = vrot.slane %v516, %v526
        %v528 = vlaneseq
        %v529 = vshrl.u32 %v528, 7
        %v530 = vsub.s32 0, %v529
        %v531 = vrot.slane %v517, %v530
        %v532 = vlaneseq
        %v533 = vshrl.u32 %v532, 7
        %v534 = vsub.s32 0, %v533
        %v535 = vrot.slane %v518, %v534
        %v536 = vlaneseq
        %v537 = vshrl.u32 %v536, 7
        %v538 = vsub.s32 0, %v537
        %v539 = vrot.slane %v519, %v538
        %540 = vset.pattern.permute.xlu0 0
        %541 = vperm.xlu0 %540, %v527
        %v542 = vpop.permute.xlu0 %541
        %544 = vset.pattern.permute.xlu0 0
        %545 = vperm.xlu0 %544, %v531
        %v546 = vpop.permute.xlu0 %545
        %548 = vset.pattern.permute.xlu0 0
        %549 = vperm.xlu0 %548, %v535
        %v550 = vpop.permute.xlu0 %549
        %552 = vset.pattern.permute.xlu0 0
        %553 = vperm.xlu0 %552, %v539
        %v554 = vpop.permute.xlu0 %553
        %v556 = vmul.f32 %v507, %v542
        %v557 = vmul.f32 %v508, %v542
        %v558 = vmul.f32 %v509, %v546
        %v559 = vmul.f32 %v510, %v546
        %v560 = vmul.f32 %v511, %v550
        %v561 = vmul.f32 %v512, %v550
        %v562 = vmul.f32 %v513, %v554
        %v563 = vmul.f32 %v514, %v554
        %v564 = vadd.f32 %v499, %v556
        %v565 = vadd.f32 %v500, %v557
        %v566 = vadd.f32 %v501, %v558
        %v567 = vadd.f32 %v502, %v559
        %v568 = vadd.f32 %v503, %v560
        %v569 = vadd.f32 %v504, %v561
        %v570 = vadd.f32 %v505, %v562
        %v571 = vadd.f32 %v506, %v563
        %s572 = scalar_lea.vmem %s1, 16
        %v573 = vld [vmem:[%s572] sm:$0x1]
        %v574 = vld [vmem:[%s572 + $0x1] sm:$0x1]
        %v575 = vld [vmem:[%s572 + $0x2] sm:$0x1]
        %v576 = vld [vmem:[%s572 + $0x3] sm:$0x1]
        %v581 = vlaneseq
        %v582 = vshrl.u32 %v581, 7
        %v583 = vsub.s32 0, %v582
        %v584 = vrot.slane %v573, %v583
        %v585 = vlaneseq
        %v586 = vshrl.u32 %v585, 7
        %v587 = vsub.s32 0, %v586
        %v588 = vrot.slane %v574, %v587
        %v589 = vlaneseq
        %v590 = vshrl.u32 %v589, 7
        %v591 = vsub.s32 0, %v590
        %v592 = vrot.slane %v575, %v591
        %v593 = vlaneseq
        %v594 = vshrl.u32 %v593, 7
        %v595 = vsub.s32 0, %v594
        %v596 = vrot.slane %v576, %v595
        %597 = vset.pattern.permute.xlu0 0
        %598 = vperm.xlu0 %597, %v584
        %v599 = vpop.permute.xlu0 %598
        %601 = vset.pattern.permute.xlu0 0
        %602 = vperm.xlu0 %601, %v588
        %v603 = vpop.permute.xlu0 %602
        %605 = vset.pattern.permute.xlu0 0
        %606 = vperm.xlu0 %605, %v592
        %v607 = vpop.permute.xlu0 %606
        %609 = vset.pattern.permute.xlu0 0
        %610 = vperm.xlu0 %609, %v596
        %v611 = vpop.permute.xlu0 %610
        %v613 = vmul.f32 %v507, %v599
        %v614 = vmul.f32 %v508, %v599
        %v615 = vmul.f32 %v509, %v603
        %v616 = vmul.f32 %v510, %v603
        %v617 = vmul.f32 %v511, %v607
        %v618 = vmul.f32 %v512, %v607
        %v619 = vmul.f32 %v513, %v611
        %v620 = vmul.f32 %v514, %v611
        %629 = vrot.lane.b32.xlu0 %v613, 127
        %v630 = vpop.permute.xlu0 %629
        %631 = vrot.lane.b32.xlu0 %v614, 127
        %v632 = vpop.permute.xlu0 %631
        %633 = vrot.lane.b32.xlu0 %v615, 127
        %v634 = vpop.permute.xlu0 %633
        %635 = vrot.lane.b32.xlu0 %v616, 127
        %v636 = vpop.permute.xlu0 %635
        %637 = vrot.lane.b32.xlu0 %v617, 127
        %v638 = vpop.permute.xlu0 %637
        %639 = vrot.lane.b32.xlu0 %v618, 127
        %v640 = vpop.permute.xlu0 %639
        %641 = vrot.lane.b32.xlu0 %v619, 127
        %v642 = vpop.permute.xlu0 %641
        %643 = vrot.lane.b32.xlu0 %v620, 127
        %v644 = vpop.permute.xlu0 %643
        %v653 = vadd.f32 %v564, %v630
        %v654 = vadd.f32 %v565, %v632
        %v655 = vadd.f32 %v566, %v634
        %v656 = vadd.f32 %v567, %v636
        %v657 = vadd.f32 %v568, %v638
        %v658 = vadd.f32 %v569, %v640
        %v659 = vadd.f32 %v570, %v642
        %v660 = vadd.f32 %v571, %v644
        %s661 = scalar_lea.vmem %s1, 20
        %v662 = vld [vmem:[%s661] sm:$0x1]
        %v663 = vld [vmem:[%s661 + $0x1] sm:$0x1]
        %v664 = vld [vmem:[%s661 + $0x2] sm:$0x1]
        %v665 = vld [vmem:[%s661 + $0x3] sm:$0x1]
        %v670 = vlaneseq
        %v671 = vshrl.u32 %v670, 7
        %v672 = vsub.s32 0, %v671
        %v673 = vrot.slane %v662, %v672
        %v674 = vlaneseq
        %v675 = vshrl.u32 %v674, 7
        %v676 = vsub.s32 0, %v675
        %v677 = vrot.slane %v663, %v676
        %v678 = vlaneseq
        %v679 = vshrl.u32 %v678, 7
        %v680 = vsub.s32 0, %v679
        %v681 = vrot.slane %v664, %v680
        %v682 = vlaneseq
        %v683 = vshrl.u32 %v682, 7
        %v684 = vsub.s32 0, %v683
        %v685 = vrot.slane %v665, %v684
        %686 = vset.pattern.permute.xlu0 0
        %687 = vperm.xlu0 %686, %v673
        %v688 = vpop.permute.xlu0 %687
        %690 = vset.pattern.permute.xlu0 0
        %691 = vperm.xlu0 %690, %v677
        %v692 = vpop.permute.xlu0 %691
        %694 = vset.pattern.permute.xlu0 0
        %695 = vperm.xlu0 %694, %v681
        %v696 = vpop.permute.xlu0 %695
        %698 = vset.pattern.permute.xlu0 0
        %699 = vperm.xlu0 %698, %v685
        %v700 = vpop.permute.xlu0 %699
        %v702 = vmul.f32 %v507, %v688
        %v703 = vmul.f32 %v508, %v688
        %v704 = vmul.f32 %v509, %v692
        %v705 = vmul.f32 %v510, %v692
        %v706 = vmul.f32 %v511, %v696
        %v707 = vmul.f32 %v512, %v696
        %v708 = vmul.f32 %v513, %v700
        %v709 = vmul.f32 %v514, %v700
        %718 = vrot.lane.b32.xlu0 %v702, 126
        %v719 = vpop.permute.xlu0 %718
        %720 = vrot.lane.b32.xlu0 %v703, 126
        %v721 = vpop.permute.xlu0 %720
        %722 = vrot.lane.b32.xlu0 %v704, 126
        %v723 = vpop.permute.xlu0 %722
        %724 = vrot.lane.b32.xlu0 %v705, 126
        %v725 = vpop.permute.xlu0 %724
        %726 = vrot.lane.b32.xlu0 %v706, 126
        %v727 = vpop.permute.xlu0 %726
        %728 = vrot.lane.b32.xlu0 %v707, 126
        %v729 = vpop.permute.xlu0 %728
        %730 = vrot.lane.b32.xlu0 %v708, 126
        %v731 = vpop.permute.xlu0 %730
        %732 = vrot.lane.b32.xlu0 %v709, 126
        %v733 = vpop.permute.xlu0 %732
        %v742 = vadd.f32 %v653, %v719
        %v743 = vadd.f32 %v654, %v721
        %v744 = vadd.f32 %v655, %v723
        %v745 = vadd.f32 %v656, %v725
        %v746 = vadd.f32 %v657, %v727
        %v747 = vadd.f32 %v658, %v729
        %v748 = vadd.f32 %v659, %v731
        %v749 = vadd.f32 %v660, %v733
        %v750 = vld [vmem:[#allocation4 + $0x2] sm:$0xff]
        %v751 = vld [vmem:[#allocation4 + $0xa] sm:$0xff]
        %v752 = vld [vmem:[#allocation4 + $0x1a] sm:$0xff]
        %v753 = vld [vmem:[#allocation4 + $0x22] sm:$0xff]
        %v754 = vld [vmem:[#allocation4 + $0x32] sm:$0xff]
        %v755 = vld [vmem:[#allocation4 + $0x3a] sm:$0xff]
        %v756 = vld [vmem:[#allocation4 + $0x4a] sm:$0xff]
        %v757 = vld [vmem:[#allocation4 + $0x52] sm:$0xff]
        %s758 = scalar_lea.vmem %s1, 24
        %v759 = vld [vmem:[%s758] sm:$0x1]
        %v760 = vld [vmem:[%s758 + $0x1] sm:$0x1]
        %v761 = vld [vmem:[%s758 + $0x2] sm:$0x1]
        %v762 = vld [vmem:[%s758 + $0x3] sm:$0x1]
        %v767 = vlaneseq
        %v768 = vshrl.u32 %v767, 7
        %v769 = vsub.s32 0, %v768
        %v770 = vrot.slane %v759, %v769
        %v771 = vlaneseq
        %v772 = vshrl.u32 %v771, 7
        %v773 = vsub.s32 0, %v772
        %v774 = vrot.slane %v760, %v773
        %v775 = vlaneseq
        %v776 = vshrl.u32 %v775, 7
        %v777 = vsub.s32 0, %v776
        %v778 = vrot.slane %v761, %v777
        %v779 = vlaneseq
        %v780 = vshrl.u32 %v779, 7
        %v781 = vsub.s32 0, %v780
        %v782 = vrot.slane %v762, %v781
        %783 = vset.pattern.permute.xlu0 0
        %784 = vperm.xlu0 %783, %v770
        %v785 = vpop.permute.xlu0 %784
        %787 = vset.pattern.permute.xlu0 0
        %788 = vperm.xlu0 %787, %v774
        %v789 = vpop.permute.xlu0 %788
        %791 = vset.pattern.permute.xlu0 0
        %792 = vperm.xlu0 %791, %v778
        %v793 = vpop.permute.xlu0 %792
        %795 = vset.pattern.permute.xlu0 0
        %796 = vperm.xlu0 %795, %v782
        %v797 = vpop.permute.xlu0 %796
        %v799 = vmul.f32 %v750, %v785
        %v800 = vmul.f32 %v751, %v785
        %v801 = vmul.f32 %v752, %v789
        %v802 = vmul.f32 %v753, %v789
        %v803 = vmul.f32 %v754, %v793
        %v804 = vmul.f32 %v755, %v793
        %v805 = vmul.f32 %v756, %v797
        %v806 = vmul.f32 %v757, %v797
        %v807 = vadd.f32 %v742, %v799
        %v808 = vadd.f32 %v743, %v800
        %v809 = vadd.f32 %v744, %v801
        %v810 = vadd.f32 %v745, %v802
        %v811 = vadd.f32 %v746, %v803
        %v812 = vadd.f32 %v747, %v804
        %v813 = vadd.f32 %v748, %v805
        %v814 = vadd.f32 %v749, %v806
        %s815 = scalar_lea.vmem %s1, 28
        %v816 = vld [vmem:[%s815] sm:$0x1]
        %v817 = vld [vmem:[%s815 + $0x1] sm:$0x1]
        %v818 = vld [vmem:[%s815 + $0x2] sm:$0x1]
        %v819 = vld [vmem:[%s815 + $0x3] sm:$0x1]
        %v824 = vlaneseq
        %v825 = vshrl.u32 %v824, 7
        %v826 = vsub.s32 0, %v825
        %v827 = vrot.slane %v816, %v826
        %v828 = vlaneseq
        %v829 = vshrl.u32 %v828, 7
        %v830 = vsub.s32 0, %v829
        %v831 = vrot.slane %v817, %v830
        %v832 = vlaneseq
        %v833 = vshrl.u32 %v832, 7
        %v834 = vsub.s32 0, %v833
        %v835 = vrot.slane %v818, %v834
        %v836 = vlaneseq
        %v837 = vshrl.u32 %v836, 7
        %v838 = vsub.s32 0, %v837
        %v839 = vrot.slane %v819, %v838
        %840 = vset.pattern.permute.xlu0 0
        %841 = vperm.xlu0 %840, %v827
        %v842 = vpop.permute.xlu0 %841
        %844 = vset.pattern.permute.xlu0 0
        %845 = vperm.xlu0 %844, %v831
        %v846 = vpop.permute.xlu0 %845
        %848 = vset.pattern.permute.xlu0 0
        %849 = vperm.xlu0 %848, %v835
        %v850 = vpop.permute.xlu0 %849
        %852 = vset.pattern.permute.xlu0 0
        %853 = vperm.xlu0 %852, %v839
        %v854 = vpop.permute.xlu0 %853
        %v856 = vmul.f32 %v750, %v842
        %v857 = vmul.f32 %v751, %v842
        %v858 = vmul.f32 %v752, %v846
        %v859 = vmul.f32 %v753, %v846
        %v860 = vmul.f32 %v754, %v850
        %v861 = vmul.f32 %v755, %v850
        %v862 = vmul.f32 %v756, %v854
        %v863 = vmul.f32 %v757, %v854
        %872 = vrot.lane.b32.xlu0 %v856, 127
        %v873 = vpop.permute.xlu0 %872
        %874 = vrot.lane.b32.xlu0 %v857, 127
        %v875 = vpop.permute.xlu0 %874
        %876 = vrot.lane.b32.xlu0 %v858, 127
        %v877 = vpop.permute.xlu0 %876
        %878 = vrot.lane.b32.xlu0 %v859, 127
        %v879 = vpop.permute.xlu0 %878
        %880 = vrot.lane.b32.xlu0 %v860, 127
        %v881 = vpop.permute.xlu0 %880
        %882 = vrot.lane.b32.xlu0 %v861, 127
        %v883 = vpop.permute.xlu0 %882
        %884 = vrot.lane.b32.xlu0 %v862, 127
        %v885 = vpop.permute.xlu0 %884
        %886 = vrot.lane.b32.xlu0 %v863, 127
        %v887 = vpop.permute.xlu0 %886
        %v896 = vadd.f32 %v807, %v873
        %v897 = vadd.f32 %v808, %v875
        %v898 = vadd.f32 %v809, %v877
        %v899 = vadd.f32 %v810, %v879
        %v900 = vadd.f32 %v811, %v881
        %v901 = vadd.f32 %v812, %v883
        %v902 = vadd.f32 %v813, %v885
        %v903 = vadd.f32 %v814, %v887
        %s904 = scalar_lea.vmem %s1, 32
        %v905 = vld [vmem:[%s904] sm:$0x1]
        %v906 = vld [vmem:[%s904 + $0x1] sm:$0x1]
        %v907 = vld [vmem:[%s904 + $0x2] sm:$0x1]
        %v908 = vld [vmem:[%s904 + $0x3] sm:$0x1]
        %v913 = vlaneseq
        %v914 = vshrl.u32 %v913, 7
        %v915 = vsub.s32 0, %v914
        %v916 = vrot.slane %v905, %v915
        %v917 = vlaneseq
        %v918 = vshrl.u32 %v917, 7
        %v919 = vsub.s32 0, %v918
        %v920 = vrot.slane %v906, %v919
        %v921 = vlaneseq
        %v922 = vshrl.u32 %v921, 7
        %v923 = vsub.s32 0, %v922
        %v924 = vrot.slane %v907, %v923
        %v925 = vlaneseq
        %v926 = vshrl.u32 %v925, 7
        %v927 = vsub.s32 0, %v926
        %v928 = vrot.slane %v908, %v927
        %929 = vset.pattern.permute.xlu0 0
        %930 = vperm.xlu0 %929, %v916
        %v931 = vpop.permute.xlu0 %930
        %933 = vset.pattern.permute.xlu0 0
        %934 = vperm.xlu0 %933, %v920
        %v935 = vpop.permute.xlu0 %934
        %937 = vset.pattern.permute.xlu0 0
        %938 = vperm.xlu0 %937, %v924
        %v939 = vpop.permute.xlu0 %938
        %941 = vset.pattern.permute.xlu0 0
        %942 = vperm.xlu0 %941, %v928
        %v943 = vpop.permute.xlu0 %942
        %v945 = vmul.f32 %v750, %v931
        %v946 = vmul.f32 %v751, %v931
        %v947 = vmul.f32 %v752, %v935
        %v948 = vmul.f32 %v753, %v935
        %v949 = vmul.f32 %v754, %v939
        %v950 = vmul.f32 %v755, %v939
        %v951 = vmul.f32 %v756, %v943
        %v952 = vmul.f32 %v757, %v943
        %961 = vrot.lane.b32.xlu0 %v945, 126
        %v962 = vpop.permute.xlu0 %961
        %963 = vrot.lane.b32.xlu0 %v946, 126
        %v964 = vpop.permute.xlu0 %963
        %965 = vrot.lane.b32.xlu0 %v947, 126
        %v966 = vpop.permute.xlu0 %965
        %967 = vrot.lane.b32.xlu0 %v948, 126
        %v968 = vpop.permute.xlu0 %967
        %969 = vrot.lane.b32.xlu0 %v949, 126
        %v970 = vpop.permute.xlu0 %969
        %971 = vrot.lane.b32.xlu0 %v950, 126
        %v972 = vpop.permute.xlu0 %971
        %973 = vrot.lane.b32.xlu0 %v951, 126
        %v974 = vpop.permute.xlu0 %973
        %975 = vrot.lane.b32.xlu0 %v952, 126
        %v976 = vpop.permute.xlu0 %975
        %v985 = vadd.f32 %v896, %v962
        %v986 = vadd.f32 %v897, %v964
        %v987 = vadd.f32 %v898, %v966
        %v988 = vadd.f32 %v899, %v968
        %v989 = vadd.f32 %v900, %v970
        %v990 = vadd.f32 %v901, %v972
        %v991 = vadd.f32 %v902, %v974
        %v992 = vadd.f32 %v903, %v976
        %vm993 = vcmask 130048
        %994 = vst.msk [vmem:[#allocation2] sm:$0xff] %vm993, %v985
        %995 = vst.msk [vmem:[#allocation2 + $0x8] sm:$0xff] %vm993, %v986
        %996 = vst.msk [vmem:[#allocation2 + $0x10] sm:$0xff] %vm993, %v987
        %997 = vst.msk [vmem:[#allocation2 + $0x18] sm:$0xff] %vm993, %v988
        %998 = vst.msk [vmem:[#allocation2 + $0x20] sm:$0xff] %vm993, %v989
        %999 = vst.msk [vmem:[#allocation2 + $0x28] sm:$0xff] %vm993, %v990
        %1000 = vst.msk [vmem:[#allocation2 + $0x30] sm:$0xff] %vm993, %v991
        %1001 = vst.msk [vmem:[#allocation2 + $0x38] sm:$0xff] %vm993, %v992
        %v1002 = vld [vmem:[#allocation2] sm:$0x1]
        %v1003 = vld [vmem:[#allocation2 + $0x10] sm:$0x1]
        %v1004 = vld [vmem:[#allocation2 + $0x20] sm:$0x1]
        %v1005 = vld [vmem:[#allocation2 + $0x30] sm:$0x1]
        %v1010 = vrot.slane %v1003, 7
        %vm1011 = vcmask 1041409
        %v1012 = vsel %vm1011, %v1010, %v1002
        %vm1013 = vcmask 1045509
        %v1014 = vsel %vm1013, %v1010, %v1012
        %v1015 = vrot.slane %v1004, 6
        %vm1016 = vcmask 1042434
        %v1017 = vsel %vm1016, %v1015, %v1014
        %vm1018 = vcmask 1046534
        %v1019 = vsel %vm1018, %v1015, %v1017
        %v1020 = vrot.slane %v1005, 5
        %vm1021 = vcmask 1043459
        %v1022 = vsel %vm1021, %v1020, %v1019
        %vm1023 = vcmask 1047559
        %v1024 = vsel %vm1023, %v1020, %v1022
        %vm1026 = vcmask 125952
        %1027 = vst.msk [vmem:[#allocation3] sm:$0xf] %vm1026, %v1024
        %v1028 = vld [vmem:[#allocation2 + $0x1] sm:$0x1]
        %v1029 = vld [vmem:[#allocation2 + $0x11] sm:$0x1]
        %v1030 = vld [vmem:[#allocation2 + $0x21] sm:$0x1]
        %v1031 = vld [vmem:[#allocation2 + $0x31] sm:$0x1]
        %v1036 = vrot.slane %v1029, 7
        %v1037 = vsel %vm1011, %v1036, %v1028
        %v1038 = vsel %vm1013, %v1036, %v1037
        %v1039 = vrot.slane %v1030, 6
        %v1040 = vsel %vm1016, %v1039, %v1038
        %v1041 = vsel %vm1018, %v1039, %v1040
        %v1042 = vrot.slane %v1031, 5
        %v1043 = vsel %vm1021, %v1042, %v1041
        %v1044 = vsel %vm1023, %v1042, %v1043
        %1045 = vrot.lane.b32.xlu0 %v1044, 16
        %v1046 = vpop.permute.xlu0 %1045
        %vm1048 = vcmask 257152
        %1049 = vst.msk [vmem:[#allocation3] sm:$0xf] %vm1048, %v1046
        %v1050 = vld [vmem:[#allocation2 + $0x2] sm:$0x1]
        %v1051 = vld [vmem:[#allocation2 + $0x12] sm:$0x1]
        %v1052 = vld [vmem:[#allocation2 + $0x22] sm:$0x1]
        %v1053 = vld [vmem:[#allocation2 + $0x32] sm:$0x1]
        %v1058 = vrot.slane %v1051, 7
        %v1059 = vsel %vm1011, %v1058, %v1050
        %v1060 = vsel %vm1013, %v1058, %v1059
        %v1061 = vrot.slane %v1052, 6
        %v1062 = vsel %vm1016, %v1061, %v1060
        %v1063 = vsel %vm1018, %v1061, %v1062
        %v1064 = vrot.slane %v1053, 5
        %v1065 = vsel %vm1021, %v1064, %v1063
        %v1066 = vsel %vm1023, %v1064, %v1065
        %1067 = vrot.lane.b32.xlu0 %v1066, 32
        %v1068 = vpop.permute.xlu0 %1067
        %vm1070 = vcmask 388352
        %1071 = vst.msk [vmem:[#allocation3] sm:$0xf] %vm1070, %v1068
        %v1072 = vld [vmem:[#allocation2 + $0x3] sm:$0x1]
        %v1073 = vld [vmem:[#allocation2 + $0x13] sm:$0x1]
        %v1074 = vld [vmem:[#allocation2 + $0x23] sm:$0x1]
        %v1075 = vld [vmem:[#allocation2 + $0x33] sm:$0x1]
        %v1080 = vrot.slane %v1073, 7
        %v1081 = vsel %vm1011, %v1080, %v1072
        %v1082 = vsel %vm1013, %v1080, %v1081
        %v1083 = vrot.slane %v1074, 6
        %v1084 = vsel %vm1016, %v1083, %v1082
        %v1085 = vsel %vm1018, %v1083, %v1084
        %v1086 = vrot.slane %v1075, 5
        %v1087 = vsel %vm1021, %v1086, %v1085
        %v1088 = vsel %vm1023, %v1086, %v1087
        %1089 = vrot.lane.b32.xlu0 %v1088, 48
        %v1090 = vpop.permute.xlu0 %1089
        %vm1092 = vcmask 519552
        %1093 = vst.msk [vmem:[#allocation3] sm:$0xf] %vm1092, %v1090
        %v1094 = vld [vmem:[#allocation2 + $0x4] sm:$0x1]
        %v1095 = vld [vmem:[#allocation2 + $0x14] sm:$0x1]
        %v1096 = vld [vmem:[#allocation2 + $0x24] sm:$0x1]
        %v1097 = vld [vmem:[#allocation2 + $0x34] sm:$0x1]
        %v1102 = vrot.slane %v1095, 7
        %v1103 = vsel %vm1011, %v1102, %v1094
        %v1104 = vsel %vm1013, %v1102, %v1103
        %v1105 = vrot.slane %v1096, 6
        %v1106 = vsel %vm1016, %v1105, %v1104
        %v1107 = vsel %vm1018, %v1105, %v1106
        %v1108 = vrot.slane %v1097, 5
        %v1109 = vsel %vm1021, %v1108, %v1107
        %v1110 = vsel %vm1023, %v1108, %v1109
        %1111 = vrot.lane.b32.xlu0 %v1110, 64
        %v1112 = vpop.permute.xlu0 %1111
        %vm1114 = vcmask 650752
        %1115 = vst.msk [vmem:[#allocation3] sm:$0xf] %vm1114, %v1112
        %v1116 = vld [vmem:[#allocation2 + $0x5] sm:$0x1]
        %v1117 = vld [vmem:[#allocation2 + $0x15] sm:$0x1]
        %v1118 = vld [vmem:[#allocation2 + $0x25] sm:$0x1]
        %v1119 = vld [vmem:[#allocation2 + $0x35] sm:$0x1]
        %v1124 = vrot.slane %v1117, 7
        %v1125 = vsel %vm1011, %v1124, %v1116
        %v1126 = vsel %vm1013, %v1124, %v1125
        %v1127 = vrot.slane %v1118, 6
        %v1128 = vsel %vm1016, %v1127, %v1126
        %v1129 = vsel %vm1018, %v1127, %v1128
        %v1130 = vrot.slane %v1119, 5
        %v1131 = vsel %vm1021, %v1130, %v1129
        %v1132 = vsel %vm1023, %v1130, %v1131
        %1133 = vrot.lane.b32.xlu0 %v1132, 80
        %v1134 = vpop.permute.xlu0 %1133
        %vm1136 = vcmask 781952
        %1137 = vst.msk [vmem:[#allocation3] sm:$0xf] %vm1136, %v1134
        %v1138 = vld [vmem:[#allocation2 + $0x6] sm:$0x1]
        %v1139 = vld [vmem:[#allocation2 + $0x16] sm:$0x1]
        %v1140 = vld [vmem:[#allocation2 + $0x26] sm:$0x1]
        %v1141 = vld [vmem:[#allocation2 + $0x36] sm:$0x1]
        %v1146 = vrot.slane %v1139, 7
        %v1147 = vsel %vm1011, %v1146, %v1138
        %v1148 = vsel %vm1013, %v1146, %v1147
        %v1149 = vrot.slane %v1140, 6
        %v1150 = vsel %vm1016, %v1149, %v1148
        %v1151 = vsel %vm1018, %v1149, %v1150
        %v1152 = vrot.slane %v1141, 5
        %v1153 = vsel %vm1021, %v1152, %v1151
        %v1154 = vsel %vm1023, %v1152, %v1153
        %1155 = vrot.lane.b32.xlu0 %v1154, 96
        %v1156 = vpop.permute.xlu0 %1155
        %vm1158 = vcmask 913152
        %1159 = vst.msk [vmem:[#allocation3] sm:$0xf] %vm1158, %v1156
        %v1160 = vld [vmem:[#allocation2 + $0x7] sm:$0x1]
        %v1161 = vld [vmem:[#allocation2 + $0x17] sm:$0x1]
        %v1162 = vld [vmem:[#allocation2 + $0x27] sm:$0x1]
        %v1163 = vld [vmem:[#allocation2 + $0x37] sm:$0x1]
        %v1168 = vrot.slane %v1161, 7
        %v1169 = vsel %vm1011, %v1168, %v1160
        %v1170 = vsel %vm1013, %v1168, %v1169
        %v1171 = vrot.slane %v1162, 6
        %v1172 = vsel %vm1016, %v1171, %v1170
        %v1173 = vsel %vm1018, %v1171, %v1172
        %v1174 = vrot.slane %v1163, 5
        %v1175 = vsel %vm1021, %v1174, %v1173
        %v1176 = vsel %vm1023, %v1174, %v1175
        %1177 = vrot.lane.b32.xlu0 %v1176, 112
        %v1178 = vpop.permute.xlu0 %1177
        %vm1180 = vcmask 1044352
        %1181 = vst.msk [vmem:[#allocation3] sm:$0xf] %vm1180, %v1178
        %v1182 = vld [vmem:[#allocation2 + $0x8] sm:$0x1]
        %v1183 = vld [vmem:[#allocation2 + $0x18] sm:$0x1]
        %v1184 = vld [vmem:[#allocation2 + $0x28] sm:$0x1]
        %v1185 = vld [vmem:[#allocation2 + $0x38] sm:$0x1]
        %v1190 = vrot.slane %v1183, 7
        %v1191 = vsel %vm1011, %v1190, %v1182
        %v1192 = vsel %vm1013, %v1190, %v1191
        %v1193 = vrot.slane %v1184, 6
        %v1194 = vsel %vm1016, %v1193, %v1192
        %v1195 = vsel %vm1018, %v1193, %v1194
        %v1196 = vrot.slane %v1185, 5
        %v1197 = vsel %vm1021, %v1196, %v1195
        %v1198 = vsel %vm1023, %v1196, %v1197
        %1200 = vst.msk [vmem:[#allocation3 + $0x4] sm:$0xf] %vm1026, %v1198
        %v1201 = vld [vmem:[#allocation2 + $0x9] sm:$0x1]
        %v1202 = vld [vmem:[#allocation2 + $0x19] sm:$0x1]
        %v1203 = vld [vmem:[#allocation2 + $0x29] sm:$0x1]
        %v1204 = vld [vmem:[#allocation2 + $0x39] sm:$0x1]
        %v1209 = vrot.slane %v1202, 7
        %v1210 = vsel %vm1011, %v1209, %v1201
        %v1211 = vsel %vm1013, %v1209, %v1210
        %v1212 = vrot.slane %v1203, 6
        %v1213 = vsel %vm1016, %v1212, %v1211
        %v1214 = vsel %vm1018, %v1212, %v1213
        %v1215 = vrot.slane %v1204, 5
        %v1216 = vsel %vm1021, %v1215, %v1214
        %v1217 = vsel %vm1023, %v1215, %v1216
        %1218 = vrot.lane.b32.xlu0 %v1217, 16
        %v1219 = vpop.permute.xlu0 %1218
        %1221 = vst.msk [vmem:[#allocation3 + $0x4] sm:$0xf] %vm1048, %v1219
        %v1222 = vld [vmem:[#allocation2 + $0xa] sm:$0x1]
        %v1223 = vld [vmem:[#allocation2 + $0x1a] sm:$0x1]
        %v1224 = vld [vmem:[#allocation2 + $0x2a] sm:$0x1]
        %v1225 = vld [vmem:[#allocation2 + $0x3a] sm:$0x1]
        %v1230 = vrot.slane %v1223, 7
        %v1231 = vsel %vm1011, %v1230, %v1222
        %v1232 = vsel %vm1013, %v1230, %v1231
        %v1233 = vrot.slane %v1224, 6
        %v1234 = vsel %vm1016, %v1233, %v1232
        %v1235 = vsel %vm1018, %v1233, %v1234
        %v1236 = vrot.slane %v1225, 5
        %v1237 = vsel %vm1021, %v1236, %v1235
        %v1238 = vsel %vm1023, %v1236, %v1237
        %1239 = vrot.lane.b32.xlu0 %v1238, 32
        %v1240 = vpop.permute.xlu0 %1239
        %1242 = vst.msk [vmem:[#allocation3 + $0x4] sm:$0xf] %vm1070, %v1240
        %v1243 = vld [vmem:[#allocation2 + $0xb] sm:$0x1]
        %v1244 = vld [vmem:[#allocation2 + $0x1b] sm:$0x1]
        %v1245 = vld [vmem:[#allocation2 + $0x2b] sm:$0x1]
        %v1246 = vld [vmem:[#allocation2 + $0x3b] sm:$0x1]
        %v1251 = vrot.slane %v1244, 7
        %v1252 = vsel %vm1011, %v1251, %v1243
        %v1253 = vsel %vm1013, %v1251, %v1252
        %v1254 = vrot.slane %v1245, 6
        %v1255 = vsel %vm1016, %v1254, %v1253
        %v1256 = vsel %vm1018, %v1254, %v1255
        %v1257 = vrot.slane %v1246, 5
        %v1258 = vsel %vm1021, %v1257, %v1256
        %v1259 = vsel %vm1023, %v1257, %v1258
        %1260 = vrot.lane.b32.xlu0 %v1259, 48
        %v1261 = vpop.permute.xlu0 %1260
        %1263 = vst.msk [vmem:[#allocation3 + $0x4] sm:$0xf] %vm1092, %v1261
        %v1264 = vld [vmem:[#allocation2 + $0xc] sm:$0x1]
        %v1265 = vld [vmem:[#allocation2 + $0x1c] sm:$0x1]
        %v1266 = vld [vmem:[#allocation2 + $0x2c] sm:$0x1]
        %v1267 = vld [vmem:[#allocation2 + $0x3c] sm:$0x1]
        %v1272 = vrot.slane %v1265, 7
        %v1273 = vsel %vm1011, %v1272, %v1264
        %v1274 = vsel %vm1013, %v1272, %v1273
        %v1275 = vrot.slane %v1266, 6
        %v1276 = vsel %vm1016, %v1275, %v1274
        %v1277 = vsel %vm1018, %v1275, %v1276
        %v1278 = vrot.slane %v1267, 5
        %v1279 = vsel %vm1021, %v1278, %v1277
        %v1280 = vsel %vm1023, %v1278, %v1279
        %1281 = vrot.lane.b32.xlu0 %v1280, 64
        %v1282 = vpop.permute.xlu0 %1281
        %1284 = vst.msk [vmem:[#allocation3 + $0x4] sm:$0xf] %vm1114, %v1282
        %v1285 = vld [vmem:[#allocation2 + $0xd] sm:$0x1]
        %v1286 = vld [vmem:[#allocation2 + $0x1d] sm:$0x1]
        %v1287 = vld [vmem:[#allocation2 + $0x2d] sm:$0x1]
        %v1288 = vld [vmem:[#allocation2 + $0x3d] sm:$0x1]
        %v1293 = vrot.slane %v1286, 7
        %v1294 = vsel %vm1011, %v1293, %v1285
        %v1295 = vsel %vm1013, %v1293, %v1294
        %v1296 = vrot.slane %v1287, 6
        %v1297 = vsel %vm1016, %v1296, %v1295
        %v1298 = vsel %vm1018, %v1296, %v1297
        %v1299 = vrot.slane %v1288, 5
        %v1300 = vsel %vm1021, %v1299, %v1298
        %v1301 = vsel %vm1023, %v1299, %v1300
        %1302 = vrot.lane.b32.xlu0 %v1301, 80
        %v1303 = vpop.permute.xlu0 %1302
        %1305 = vst.msk [vmem:[#allocation3 + $0x4] sm:$0xf] %vm1136, %v1303
        %v1306 = vld [vmem:[#allocation2 + $0xe] sm:$0x1]
        %v1307 = vld [vmem:[#allocation2 + $0x1e] sm:$0x1]
        %v1308 = vld [vmem:[#allocation2 + $0x2e] sm:$0x1]
        %v1309 = vld [vmem:[#allocation2 + $0x3e] sm:$0x1]
        %v1314 = vrot.slane %v1307, 7
        %v1315 = vsel %vm1011, %v1314, %v1306
        %v1316 = vsel %vm1013, %v1314, %v1315
        %v1317 = vrot.slane %v1308, 6
        %v1318 = vsel %vm1016, %v1317, %v1316
        %v1319 = vsel %vm1018, %v1317, %v1318
        %v1320 = vrot.slane %v1309, 5
        %v1321 = vsel %vm1021, %v1320, %v1319
        %v1322 = vsel %vm1023, %v1320, %v1321
        %1323 = vrot.lane.b32.xlu0 %v1322, 96
        %v1324 = vpop.permute.xlu0 %1323
        %1326 = vst.msk [vmem:[#allocation3 + $0x4] sm:$0xf] %vm1158, %v1324
        %v1327 = vld [vmem:[#allocation2 + $0xf] sm:$0x1]
        %v1328 = vld [vmem:[#allocation2 + $0x1f] sm:$0x1]
        %v1329 = vld [vmem:[#allocation2 + $0x2f] sm:$0x1]
        %v1330 = vld [vmem:[#allocation2 + $0x3f] sm:$0x1]
        %v1335 = vrot.slane %v1328, 7
        %v1336 = vsel %vm1011, %v1335, %v1327
        %v1337 = vsel %vm1013, %v1335, %v1336
        %v1338 = vrot.slane %v1329, 6
        %v1339 = vsel %vm1016, %v1338, %v1337
        %v1340 = vsel %vm1018, %v1338, %v1339
        %v1341 = vrot.slane %v1330, 5
        %v1342 = vsel %vm1021, %v1341, %v1340
        %v1343 = vsel %vm1023, %v1341, %v1342
        %1344 = vrot.lane.b32.xlu0 %v1343, 112
        %v1345 = vpop.permute.xlu0 %1344
        %1347 = vst.msk [vmem:[#allocation3 + $0x4] sm:$0xf] %vm1180, %v1345
        %v1348 = vld [vmem:[%s2] sm:$0xff]
        %v1349 = vld [vmem:[#allocation3] sm:$0xff]
        %v1351 = vcombine.high %v1349, %v1349
        %vm1352 = vcmask 31744
        %v1354 = vsel %vm1352, %v1348, 0
        %vm1356 = vcmask 1043456
        %v1357 = vsel %vm1356, %v1349, 0
        %v1359 = vsel %vm1356, %v1351, 0
        %1361 = vmatprep.subr.mxu0 0.0
        %1362 = vmatpush1.msra.mxu0 0.0
        %1363 = vmatprep.subr.mxu0 0.0
        %1364 = vmatpush1.msra.mxu0 0.0
        %1365 = vmatprep.subr.mxu0 0.0
        %1366 = vmatpush1.msra.mxu0 0.0
        %1367 = vmatprep.subr.mxu0 0.0
        %1368 = vmatpush1.msra.mxu0 0.0
        %1369 = vmatprep.subr.mxu0 0.0
        %1370 = vmatpush1.msra.mxu0 0.0
        %1371 = vmatprep.subr.mxu0 0.0
        %1372 = vmatpush1.msra.mxu0 0.0
        %1373 = vmatprep.subr.mxu0 0.0
        %1374 = vmatpush1.msra.mxu0 0.0
        %1375 = vmatprep.subr.mxu0 0.0
        %1376 = vmatpush1.msra.mxu0 0.0
        %1377 = vmatprep.subr.mxu0 0.0
        %1378 = vmatpush1.msra.mxu0 0.0
        %1379 = vmatprep.subr.mxu0 0.0
        %1380 = vmatpush1.msra.mxu0 0.0
        %1381 = vmatprep.subr.mxu0 0.0
        %1382 = vmatpush1.msra.mxu0 0.0
        %1383 = vmatprep.subr.mxu0 0.0
        %1384 = vmatpush1.msra.mxu0 0.0
        %1385 = vmatprep.subr.mxu0 0.0
        %1386 = vmatpush1.msra.mxu0 0.0
        %1387 = vmatprep.subr.mxu0 0.0
        %1388 = vmatpush1.msra.mxu0 0.0
        %1389 = vmatprep.subr.mxu0 0.0
        %1390 = vmatpush1.msra.mxu0 0.0
        %1391 = vmatprep.subr.mxu0 %v1359
        %1392 = vmatpush1.msra.mxu0 %v1357
        %1393 = vmatprep.subr.mxu0 0.0
        %1394 = vmatpush2.msra.mxu0 0.0
        %1395 = vmatprep.subr.mxu0 0.0
        %1396 = vmatpush2.msra.mxu0 0.0
        %1397 = vmatprep.subr.mxu0 0.0
        %1398 = vmatpush2.msra.mxu0 0.0
        %1399 = vmatprep.subr.mxu0 0.0
        %1400 = vmatpush2.msra.mxu0 0.0
        %1401 = vmatprep.subr.mxu0 0.0
        %1402 = vmatpush2.msra.mxu0 0.0
        %1403 = vmatprep.subr.mxu0 0.0
        %1404 = vmatpush2.msra.mxu0 0.0
        %1405 = vmatprep.subr.mxu0 0.0
        %1406 = vmatpush2.msra.mxu0 0.0
        %1407 = vmatprep.subr.mxu0 0.0
        %1408 = vmatpush2.msra.mxu0 0.0
        %1409 = vmatprep.subr.mxu0 0.0
        %1410 = vmatpush2.msra.mxu0 0.0
        %1411 = vmatprep.subr.mxu0 0.0
        %1412 = vmatpush2.msra.mxu0 0.0
        %1413 = vmatprep.subr.mxu0 0.0
        %1414 = vmatpush2.msra.mxu0 0.0
        %1415 = vmatprep.subr.mxu0 0.0
        %1416 = vmatpush2.msra.mxu0 0.0
        %1417 = vmatprep.subr.mxu0 0.0
        %1418 = vmatpush2.msra.mxu0 0.0
        %1419 = vmatprep.subr.mxu0 0.0
        %1420 = vmatpush2.msra.mxu0 0.0
        %1421 = vmatprep.subr.mxu0 0.0
        %1422 = vmatpush2.msra.mxu0 0.0
        %1423 = vmatprep.subr.mxu0 0.0
        %1424 = vmatpush2.msra.mxu0 0.0
        %1425 = vmatprep.mubr.f32.mxu0 0.0
        %1426 = vmatmul.mubr.f32.gmra.mxu0 %v1354
        %v1427 = vpop.f32.mrf.mxu0
        %v1428 = vadd.f32 0.0, %v1427
        %v1429 = vpop.f32.mrf.mxu0
        %v1430 = vadd.f32 0.0, %v1429
        %1431 = vdwg.mxu0
        %1432 = vst [vmem:[%s188] sm:$0xff] %v1428
        %1433 = vst [vmem:[%s188 + $0x8] sm:$0xff] %v1430
        %s1434 = sand.u32 %s96, 1
        %s1435 = scalar_lea.sflag [#allocation7], %s1434
        %s1436 = sand.u32 %s96, 1
        %s1437 = smul.addr %s1436, 16
        %s1438 = scalar_lea.vmem [#allocation8], %s1437
        // Predicated region
        $region37: #{tpu_custom_call.1} parent=31 // pred_check
          %p1439 = pneg %p106
        $region38: #{tpu_custom_call.1} parent=31 // pred_check_branch
          %1441 = sbr.rel (%p1439) target = $region40
        $region39: #{tpu_custom_call.1} parent=31 // pred_region
          %s1443 = ssub.s32 256, 256
          %1444 = vsyncadd %s1435, %s1443
          %s1445 = smul.addr %s20, 2
          %s1446 = smul.addr %s1445, 128
          %s1447 = scalar_lea.hbm %s3, %s1446
          %s1449 = sshll.u32 %s1438, 4
          %s1450 = int_to_ptr.vmem [resolvable:$true] %s1449
          %1452 = dma.vmem_to_hbm [thread:$0]  %s1450, 256, %s1447, %s1435
        $region40: #{tpu_custom_call.1} parent=31 // pred_fallthru
          _
      $region32: #{tpu_custom_call.1} parent=5 // pred_fallthru
        _
      %p1453 = scmp.le.s32.totalorder 2, %s15
      // Predicated region
      $region41: #{tpu_custom_call.1} parent=5 // pred_check
        %p1454 = pneg %p1453
      $region42: #{tpu_custom_call.1} parent=5 // pred_check_branch
        %1456 = sbr.rel (%p1454) target = $region44
      $region43: #{tpu_custom_call.1} parent=5 // pred_region
        %s1457 = ssub.s32 %s15, 2
        // Predicated region
        $region45: #{tpu_custom_call.1} parent=43 // pred_check
          %p1458 = pneg %p112
        $region46: #{tpu_custom_call.1} parent=43 // pred_check_branch
          %1460 = sbr.rel (%p1458) target = $region48
        $region47: #{tpu_custom_call.1} parent=43 // pred_region
          %s1461 = sand.u32 %s97, 1
          %s1462 = scalar_lea.sflag [#allocation7], %s1461
          %s1463 = sand.u32 %s97, 1
          %s1464 = smul.addr %s1463, 16
          %s1465 = scalar_lea.vmem [#allocation8], %s1464
          %1466 = dma.done %s1462, 256
        $region48: #{tpu_custom_call.1} parent=43 // pred_fallthru
          _
      $region44: #{tpu_custom_call.1} parent=5 // pred_fallthru
        _
    $region6: #{tpu_custom_call.1} parent=1 // loop_footer
      %s19 = sadd.s32 1, %s15
    $region7: #{tpu_custom_call.1} parent=1 // loop_footer_branch
      %14 = sbr.rel target = $region3
    $region8: #{tpu_custom_call.1} parent=1 // loop_exit
      _
    %1467 = vsyncpa [#allocation6], 1
    %s1468 = scalar_lea.sflag [#allocation6], 1
    %1469 = vsyncpa %s1468, 1
    %1470 = vsyncpa [#allocation7], 1
    %s1471 = scalar_lea.sflag [#allocation7], 1
    %1472 = vsyncpa %s1471, 1

</llo_original>
